<compile_context>
chip_gen: v7x
topology: tpu7x:2x2x1
jax: 0.10.0
libtpu: 0.0.40
codegen_flags: <defaults>
</compile_context>

<pallas_src>
import jax
import jax.numpy as jnp
from jax import lax
from jax.experimental import pallas as pl
from jax.experimental.pallas import tpu as pltpu

LANES = 128
SUBLANES = 8


def fnn_kernel(x_ref,                      # (8, TS, 128) VMEM batch tile
               w1_ref, b1_ref,             # SMEM scalars, PyTorch layout
               w2_ref, b2_ref,
               w3_ref, b3_ref,
               w4_ref, b4_ref,
               o_ref):                     # (TS, 128) VMEM lane-dense output
    ts = o_ref.shape[0]                    # sublane rows in this batch tile
    chunk = 16 if ts % 16 == 0 else 8      # sublanes per inner step (vreg-friendly)
    n_chunks = ts // chunk
    n_feats = x_ref.shape[0]

    # Hoist all 71 weight/bias scalars out of the batch-chunk loop: one SMEM
    # read each per grid step (scalar slots have plenty of slack).
    layers = []
    for (w_ref, b_ref) in ((w1_ref, b1_ref), (w2_ref, b2_ref),
                           (w3_ref, b3_ref), (w4_ref, b4_ref)):
        n_out, n_in = w_ref.shape          # static (SMEM block == full array)
        w = [[w_ref[o, i] for i in range(n_in)] for o in range(n_out)]
        b = [b_ref[o] for o in range(n_out)]
        layers.append((w, b))

    def _sigmoid(v):
        # Stable: exp argument is always <= 0.  exp -> EUP; the exact
        # reciprocal keeps the 1e-5 match with the reference.
        e = jnp.exp(-jnp.abs(v))
        num = jnp.where(v >= 0, 1.0, e)
        return num * pl.reciprocal(1.0 + e, approx=False)

    def _layer(w, b, rows):
        # rows: list of (chunk, 128) slabs, one per input feature.
        outs = []
        for o in range(len(w)):
            acc = rows[0] * w[o][0]        # scalar (SMEM) x vector (VPU FMA)
            for i in range(1, len(w[o])):
                acc = acc + rows[i] * w[o][i]
            outs.append(_sigmoid(acc + b[o]))
        return outs

    def body(c, carry):
        s0 = pl.multiple_of(c * chunk, chunk)
        sl = pl.ds(s0, chunk)
        rows = [x_ref[i, sl, :] for i in range(n_feats)]
        for (w, b) in layers:
            rows = _layer(w, b, rows)
        o_ref[sl, :] = rows[0].astype(o_ref.dtype)
        return carry

    # Short, fixed trip count (<= 16): fully unroll for LLO scheduler visibility.
    lax.fori_loop(0, n_chunks, body, 0, unroll=True)


def _round_up(a, b):
    return (a + b - 1) // b * b


def fnn_forward(x, params, *, max_tile_sublanes=256):
    """x: (B, 8) float32 -> (B, 1) float32 (same semantics as FNNModel.forward)."""
    (w1, b1), (w2, b2), (w3, b3), (w4, b4) = params
    B, F = x.shape

    # Batch tile: up to max_tile_sublanes*128 rows per grid step (a multiple of
    # 8 sublanes so blocks are (8,128)-aligned), shrunk for small batches so we
    # never pad more than one tile's worth of rows.
    ts = min(max_tile_sublanes, _round_up(pl.cdiv(B, LANES), SUBLANES))
    rows_per_tile = ts * LANES
    Bp = _round_up(B, rows_per_tile)
    n_tiles = Bp // rows_per_tile
    S = Bp // LANES                        # total sublane rows

    # Wrapper-side layout plumbing: batch on (sublane, lane), features leading.
    xt = jnp.pad(x.astype(jnp.float32).T, ((0, 0), (0, Bp - B)))
    x3 = xt.reshape(F, S, LANES)

    smem = pl.BlockSpec(memory_space=pltpu.MemorySpace.SMEM)

    out = pl.pallas_call(
        fnn_kernel,
        out_shape=jax.ShapeDtypeStruct((S, LANES), jnp.float32),
        grid=(n_tiles,),
        in_specs=[
            pl.BlockSpec((F, ts, LANES), lambda g: (0, g, 0)),
            smem, smem,                    # w1, b1
            smem, smem,                    # w2, b2
            smem, smem,                    # w3, b3
            smem, smem,                    # w4, b4
        ],
        out_specs=pl.BlockSpec((ts, LANES), lambda g: (g, 0)),
        compiler_params=pltpu.CompilerParams(
            dimension_semantics=("parallel",),
        ),
    )(x3, w1, b1, w2, b2, w3, b3, w4, b4)

    return out.reshape(Bp)[:B].reshape(B, 1)


def init_params(key):
    """PyTorch nn.Linear default init: U(-1/sqrt(fan_in), 1/sqrt(fan_in)) for
    both weight and bias.  Weight stored (out_features, in_features)."""
    dims = [(8, 6), (6, 4), (4, 2), (2, 1)]
    params = []
    for (fan_in, fan_out) in dims:
        key, kw, kb = jax.random.split(key, 3)
        bound = 1.0 / (fan_in ** 0.5)
        w = jax.random.uniform(kw, (fan_out, fan_in), jnp.float32,
                               minval=-bound, maxval=bound)
        b = jax.random.uniform(kb, (fan_out,), jnp.float32,
                               minval=-bound, maxval=bound)
        params.append((w, b))
    return params


def reference_forward(x, params):
    h = x
    for (w, b) in params:
        h = jax.nn.sigmoid(h @ w.T + b)
    return h


if __name__ == "__main__":
    key = jax.random.PRNGKey(0)
    k_x, k_p, k_x2 = jax.random.split(key, 3)

    params = init_params(k_p)

    # Small smoke test (features=8 as implied by the module).
    batch = 8
    x = jax.random.normal(k_x, (batch, 8), jnp.float32)
    out = jax.block_until_ready(fnn_forward(x, params))
    ref = reference_forward(x, params)
    assert out.shape == (batch, 1), out.shape
    assert jnp.allclose(out, ref, atol=1e-5, rtol=1e-5)

    # Non-tile-aligned batch exercising the padding / tile-shrink path.
    batch2 = 9000
    x2 = jax.random.normal(k_x2, (batch2, 8), jnp.float32)
    out2 = jax.block_until_ready(fnn_forward(x2, params))
    ref2 = reference_forward(x2, params)
    assert out2.shape == (batch2, 1), out2.shape
    assert jnp.allclose(out2, ref2, atol=1e-5, rtol=1e-5)

    print("KERNEL_OK")
</pallas_src>

<mosaic_0001>
module attributes {stable_mosaic.version = 11 : i64} {
  func.func @fnn_kernel(%arg0: i32, %arg1: memref<8x8x128xf32, #tpu.memory_space<vmem>>, %arg2: memref<6x8xf32, #tpu.memory_space<smem>>, %arg3: memref<6xf32, #tpu.memory_space<smem>>, %arg4: memref<4x6xf32, #tpu.memory_space<smem>>, %arg5: memref<4xf32, #tpu.memory_space<smem>>, %arg6: memref<2x4xf32, #tpu.memory_space<smem>>, %arg7: memref<2xf32, #tpu.memory_space<smem>>, %arg8: memref<1x2xf32, #tpu.memory_space<smem>>, %arg9: memref<1xf32, #tpu.memory_space<smem>>, %arg10: memref<8x128xf32, #tpu.memory_space<vmem>>) attributes {dimension_semantics = [#tpu.dimension_semantics<parallel>], iteration_bounds = array<i64: 1>, scalar_prefetch = 0 : i64, scratch_operands = 0 : i64, tpu.core_type = #tpu.core_type<tc>, window_params = [{transform_indices = @transform_0, window_bounds = array<i64: 8, 8, 128>}, {transform_indices = @transform_1, window_bounds = array<i64: 6, 8>}, {transform_indices = @transform_2, window_bounds = array<i64: 6>}, {transform_indices = @transform_3, window_bounds = array<i64: 4, 6>}, {transform_indices = @transform_4, window_bounds = array<i64: 4>}, {transform_indices = @transform_5, window_bounds = array<i64: 2, 4>}, {transform_indices = @transform_6, window_bounds = array<i64: 2>}, {transform_indices = @transform_7, window_bounds = array<i64: 1, 2>}, {transform_indices = @transform_8, window_bounds = array<i64: 1>}, {transform_indices = @transform_9, window_bounds = array<i64: 8, 128>}]} {
    %c0 = arith.constant 0 : index
    %c0_0 = arith.constant 0 : index
    %0 = memref.load %arg2[%c0, %c0_0] : memref<6x8xf32, #tpu.memory_space<smem>>
    %c0_1 = arith.constant 0 : index
    %c1 = arith.constant 1 : index
    %1 = memref.load %arg2[%c0_1, %c1] : memref<6x8xf32, #tpu.memory_space<smem>>
    %c0_2 = arith.constant 0 : index
    %c2 = arith.constant 2 : index
    %2 = memref.load %arg2[%c0_2, %c2] : memref<6x8xf32, #tpu.memory_space<smem>>
    %c0_3 = arith.constant 0 : index
    %c3 = arith.constant 3 : index
    %3 = memref.load %arg2[%c0_3, %c3] : memref<6x8xf32, #tpu.memory_space<smem>>
    %c0_4 = arith.constant 0 : index
    %c4 = arith.constant 4 : index
    %4 = memref.load %arg2[%c0_4, %c4] : memref<6x8xf32, #tpu.memory_space<smem>>
    %c0_5 = arith.constant 0 : index
    %c5 = arith.constant 5 : index
    %5 = memref.load %arg2[%c0_5, %c5] : memref<6x8xf32, #tpu.memory_space<smem>>
    %c0_6 = arith.constant 0 : index
    %c6 = arith.constant 6 : index
    %6 = memref.load %arg2[%c0_6, %c6] : memref<6x8xf32, #tpu.memory_space<smem>>
    %c0_7 = arith.constant 0 : index
    %c7 = arith.constant 7 : index
    %7 = memref.load %arg2[%c0_7, %c7] : memref<6x8xf32, #tpu.memory_space<smem>>
    %c1_8 = arith.constant 1 : index
    %c0_9 = arith.constant 0 : index
    %8 = memref.load %arg2[%c1_8, %c0_9] : memref<6x8xf32, #tpu.memory_space<smem>>
    %c1_10 = arith.constant 1 : index
    %c1_11 = arith.constant 1 : index
    %9 = memref.load %arg2[%c1_10, %c1_11] : memref<6x8xf32, #tpu.memory_space<smem>>
    %c1_12 = arith.constant 1 : index
    %c2_13 = arith.constant 2 : index
    %10 = memref.load %arg2[%c1_12, %c2_13] : memref<6x8xf32, #tpu.memory_space<smem>>
    %c1_14 = arith.constant 1 : index
    %c3_15 = arith.constant 3 : index
    %11 = memref.load %arg2[%c1_14, %c3_15] : memref<6x8xf32, #tpu.memory_space<smem>>
    %c1_16 = arith.constant 1 : index
    %c4_17 = arith.constant 4 : index
    %12 = memref.load %arg2[%c1_16, %c4_17] : memref<6x8xf32, #tpu.memory_space<smem>>
    %c1_18 = arith.constant 1 : index
    %c5_19 = arith.constant 5 : index
    %13 = memref.load %arg2[%c1_18, %c5_19] : memref<6x8xf32, #tpu.memory_space<smem>>
    %c1_20 = arith.constant 1 : index
    %c6_21 = arith.constant 6 : index
    %14 = memref.load %arg2[%c1_20, %c6_21] : memref<6x8xf32, #tpu.memory_space<smem>>
    %c1_22 = arith.constant 1 : index
    %c7_23 = arith.constant 7 : index
    %15 = memref.load %arg2[%c1_22, %c7_23] : memref<6x8xf32, #tpu.memory_space<smem>>
    %c2_24 = arith.constant 2 : index
    %c0_25 = arith.constant 0 : index
    %16 = memref.load %arg2[%c2_24, %c0_25] : memref<6x8xf32, #tpu.memory_space<smem>>
    %c2_26 = arith.constant 2 : index
    %c1_27 = arith.constant 1 : index
    %17 = memref.load %arg2[%c2_26, %c1_27] : memref<6x8xf32, #tpu.memory_space<smem>>
    %c2_28 = arith.constant 2 : index
    %c2_29 = arith.constant 2 : index
    %18 = memref.load %arg2[%c2_28, %c2_29] : memref<6x8xf32, #tpu.memory_space<smem>>
    %c2_30 = arith.constant 2 : index
    %c3_31 = arith.constant 3 : index
    %19 = memref.load %arg2[%c2_30, %c3_31] : memref<6x8xf32, #tpu.memory_space<smem>>
    %c2_32 = arith.constant 2 : index
    %c4_33 = arith.constant 4 : index
    %20 = memref.load %arg2[%c2_32, %c4_33] : memref<6x8xf32, #tpu.memory_space<smem>>
    %c2_34 = arith.constant 2 : index
    %c5_35 = arith.constant 5 : index
    %21 = memref.load %arg2[%c2_34, %c5_35] : memref<6x8xf32, #tpu.memory_space<smem>>
    %c2_36 = arith.constant 2 : index
    %c6_37 = arith.constant 6 : index
    %22 = memref.load %arg2[%c2_36, %c6_37] : memref<6x8xf32, #tpu.memory_space<smem>>
    %c2_38 = arith.constant 2 : index
    %c7_39 = arith.constant 7 : index
    %23 = memref.load %arg2[%c2_38, %c7_39] : memref<6x8xf32, #tpu.memory_space<smem>>
    %c3_40 = arith.constant 3 : index
    %c0_41 = arith.constant 0 : index
    %24 = memref.load %arg2[%c3_40, %c0_41] : memref<6x8xf32, #tpu.memory_space<smem>>
    %c3_42 = arith.constant 3 : index
    %c1_43 = arith.constant 1 : index
    %25 = memref.load %arg2[%c3_42, %c1_43] : memref<6x8xf32, #tpu.memory_space<smem>>
    %c3_44 = arith.constant 3 : index
    %c2_45 = arith.constant 2 : index
    %26 = memref.load %arg2[%c3_44, %c2_45] : memref<6x8xf32, #tpu.memory_space<smem>>
    %c3_46 = arith.constant 3 : index
    %c3_47 = arith.constant 3 : index
    %27 = memref.load %arg2[%c3_46, %c3_47] : memref<6x8xf32, #tpu.memory_space<smem>>
    %c3_48 = arith.constant 3 : index
    %c4_49 = arith.constant 4 : index
    %28 = memref.load %arg2[%c3_48, %c4_49] : memref<6x8xf32, #tpu.memory_space<smem>>
    %c3_50 = arith.constant 3 : index
    %c5_51 = arith.constant 5 : index
    %29 = memref.load %arg2[%c3_50, %c5_51] : memref<6x8xf32, #tpu.memory_space<smem>>
    %c3_52 = arith.constant 3 : index
    %c6_53 = arith.constant 6 : index
    %30 = memref.load %arg2[%c3_52, %c6_53] : memref<6x8xf32, #tpu.memory_space<smem>>
    %c3_54 = arith.constant 3 : index
    %c7_55 = arith.constant 7 : index
    %31 = memref.load %arg2[%c3_54, %c7_55] : memref<6x8xf32, #tpu.memory_space<smem>>
    %c4_56 = arith.constant 4 : index
    %c0_57 = arith.constant 0 : index
    %32 = memref.load %arg2[%c4_56, %c0_57] : memref<6x8xf32, #tpu.memory_space<smem>>
    %c4_58 = arith.constant 4 : index
    %c1_59 = arith.constant 1 : index
    %33 = memref.load %arg2[%c4_58, %c1_59] : memref<6x8xf32, #tpu.memory_space<smem>>
    %c4_60 = arith.constant 4 : index
    %c2_61 = arith.constant 2 : index
    %34 = memref.load %arg2[%c4_60, %c2_61] : memref<6x8xf32, #tpu.memory_space<smem>>
    %c4_62 = arith.constant 4 : index
    %c3_63 = arith.constant 3 : index
    %35 = memref.load %arg2[%c4_62, %c3_63] : memref<6x8xf32, #tpu.memory_space<smem>>
    %c4_64 = arith.constant 4 : index
    %c4_65 = arith.constant 4 : index
    %36 = memref.load %arg2[%c4_64, %c4_65] : memref<6x8xf32, #tpu.memory_space<smem>>
    %c4_66 = arith.constant 4 : index
    %c5_67 = arith.constant 5 : index
    %37 = memref.load %arg2[%c4_66, %c5_67] : memref<6x8xf32, #tpu.memory_space<smem>>
    %c4_68 = arith.constant 4 : index
    %c6_69 = arith.constant 6 : index
    %38 = memref.load %arg2[%c4_68, %c6_69] : memref<6x8xf32, #tpu.memory_space<smem>>
    %c4_70 = arith.constant 4 : index
    %c7_71 = arith.constant 7 : index
    %39 = memref.load %arg2[%c4_70, %c7_71] : memref<6x8xf32, #tpu.memory_space<smem>>
    %c5_72 = arith.constant 5 : index
    %c0_73 = arith.constant 0 : index
    %40 = memref.load %arg2[%c5_72, %c0_73] : memref<6x8xf32, #tpu.memory_space<smem>>
    %c5_74 = arith.constant 5 : index
    %c1_75 = arith.constant 1 : index
    %41 = memref.load %arg2[%c5_74, %c1_75] : memref<6x8xf32, #tpu.memory_space<smem>>
    %c5_76 = arith.constant 5 : index
    %c2_77 = arith.constant 2 : index
    %42 = memref.load %arg2[%c5_76, %c2_77] : memref<6x8xf32, #tpu.memory_space<smem>>
    %c5_78 = arith.constant 5 : index
    %c3_79 = arith.constant 3 : index
    %43 = memref.load %arg2[%c5_78, %c3_79] : memref<6x8xf32, #tpu.memory_space<smem>>
    %c5_80 = arith.constant 5 : index
    %c4_81 = arith.constant 4 : index
    %44 = memref.load %arg2[%c5_80, %c4_81] : memref<6x8xf32, #tpu.memory_space<smem>>
    %c5_82 = arith.constant 5 : index
    %c5_83 = arith.constant 5 : index
    %45 = memref.load %arg2[%c5_82, %c5_83] : memref<6x8xf32, #tpu.memory_space<smem>>
    %c5_84 = arith.constant 5 : index
    %c6_85 = arith.constant 6 : index
    %46 = memref.load %arg2[%c5_84, %c6_85] : memref<6x8xf32, #tpu.memory_space<smem>>
    %c5_86 = arith.constant 5 : index
    %c7_87 = arith.constant 7 : index
    %47 = memref.load %arg2[%c5_86, %c7_87] : memref<6x8xf32, #tpu.memory_space<smem>>
    %c0_88 = arith.constant 0 : index
    %48 = memref.load %arg3[%c0_88] : memref<6xf32, #tpu.memory_space<smem>>
    %c1_89 = arith.constant 1 : index
    %49 = memref.load %arg3[%c1_89] : memref<6xf32, #tpu.memory_space<smem>>
    %c2_90 = arith.constant 2 : index
    %50 = memref.load %arg3[%c2_90] : memref<6xf32, #tpu.memory_space<smem>>
    %c3_91 = arith.constant 3 : index
    %51 = memref.load %arg3[%c3_91] : memref<6xf32, #tpu.memory_space<smem>>
    %c4_92 = arith.constant 4 : index
    %52 = memref.load %arg3[%c4_92] : memref<6xf32, #tpu.memory_space<smem>>
    %c5_93 = arith.constant 5 : index
    %53 = memref.load %arg3[%c5_93] : memref<6xf32, #tpu.memory_space<smem>>
    %c0_94 = arith.constant 0 : index
    %c0_95 = arith.constant 0 : index
    %54 = memref.load %arg4[%c0_94, %c0_95] : memref<4x6xf32, #tpu.memory_space<smem>>
    %c0_96 = arith.constant 0 : index
    %c1_97 = arith.constant 1 : index
    %55 = memref.load %arg4[%c0_96, %c1_97] : memref<4x6xf32, #tpu.memory_space<smem>>
    %c0_98 = arith.constant 0 : index
    %c2_99 = arith.constant 2 : index
    %56 = memref.load %arg4[%c0_98, %c2_99] : memref<4x6xf32, #tpu.memory_space<smem>>
    %c0_100 = arith.constant 0 : index
    %c3_101 = arith.constant 3 : index
    %57 = memref.load %arg4[%c0_100, %c3_101] : memref<4x6xf32, #tpu.memory_space<smem>>
    %c0_102 = arith.constant 0 : index
    %c4_103 = arith.constant 4 : index
    %58 = memref.load %arg4[%c0_102, %c4_103] : memref<4x6xf32, #tpu.memory_space<smem>>
    %c0_104 = arith.constant 0 : index
    %c5_105 = arith.constant 5 : index
    %59 = memref.load %arg4[%c0_104, %c5_105] : memref<4x6xf32, #tpu.memory_space<smem>>
    %c1_106 = arith.constant 1 : index
    %c0_107 = arith.constant 0 : index
    %60 = memref.load %arg4[%c1_106, %c0_107] : memref<4x6xf32, #tpu.memory_space<smem>>
    %c1_108 = arith.constant 1 : index
    %c1_109 = arith.constant 1 : index
    %61 = memref.load %arg4[%c1_108, %c1_109] : memref<4x6xf32, #tpu.memory_space<smem>>
    %c1_110 = arith.constant 1 : index
    %c2_111 = arith.constant 2 : index
    %62 = memref.load %arg4[%c1_110, %c2_111] : memref<4x6xf32, #tpu.memory_space<smem>>
    %c1_112 = arith.constant 1 : index
    %c3_113 = arith.constant 3 : index
    %63 = memref.load %arg4[%c1_112, %c3_113] : memref<4x6xf32, #tpu.memory_space<smem>>
    %c1_114 = arith.constant 1 : index
    %c4_115 = arith.constant 4 : index
    %64 = memref.load %arg4[%c1_114, %c4_115] : memref<4x6xf32, #tpu.memory_space<smem>>
    %c1_116 = arith.constant 1 : index
    %c5_117 = arith.constant 5 : index
    %65 = memref.load %arg4[%c1_116, %c5_117] : memref<4x6xf32, #tpu.memory_space<smem>>
    %c2_118 = arith.constant 2 : index
    %c0_119 = arith.constant 0 : index
    %66 = memref.load %arg4[%c2_118, %c0_119] : memref<4x6xf32, #tpu.memory_space<smem>>
    %c2_120 = arith.constant 2 : index
    %c1_121 = arith.constant 1 : index
    %67 = memref.load %arg4[%c2_120, %c1_121] : memref<4x6xf32, #tpu.memory_space<smem>>
    %c2_122 = arith.constant 2 : index
    %c2_123 = arith.constant 2 : index
    %68 = memref.load %arg4[%c2_122, %c2_123] : memref<4x6xf32, #tpu.memory_space<smem>>
    %c2_124 = arith.constant 2 : index
    %c3_125 = arith.constant 3 : index
    %69 = memref.load %arg4[%c2_124, %c3_125] : memref<4x6xf32, #tpu.memory_space<smem>>
    %c2_126 = arith.constant 2 : index
    %c4_127 = arith.constant 4 : index
    %70 = memref.load %arg4[%c2_126, %c4_127] : memref<4x6xf32, #tpu.memory_space<smem>>
    %c2_128 = arith.constant 2 : index
    %c5_129 = arith.constant 5 : index
    %71 = memref.load %arg4[%c2_128, %c5_129] : memref<4x6xf32, #tpu.memory_space<smem>>
    %c3_130 = arith.constant 3 : index
    %c0_131 = arith.constant 0 : index
    %72 = memref.load %arg4[%c3_130, %c0_131] : memref<4x6xf32, #tpu.memory_space<smem>>
    %c3_132 = arith.constant 3 : index
    %c1_133 = arith.constant 1 : index
    %73 = memref.load %arg4[%c3_132, %c1_133] : memref<4x6xf32, #tpu.memory_space<smem>>
    %c3_134 = arith.constant 3 : index
    %c2_135 = arith.constant 2 : index
    %74 = memref.load %arg4[%c3_134, %c2_135] : memref<4x6xf32, #tpu.memory_space<smem>>
    %c3_136 = arith.constant 3 : index
    %c3_137 = arith.constant 3 : index
    %75 = memref.load %arg4[%c3_136, %c3_137] : memref<4x6xf32, #tpu.memory_space<smem>>
    %c3_138 = arith.constant 3 : index
    %c4_139 = arith.constant 4 : index
    %76 = memref.load %arg4[%c3_138, %c4_139] : memref<4x6xf32, #tpu.memory_space<smem>>
    %c3_140 = arith.constant 3 : index
    %c5_141 = arith.constant 5 : index
    %77 = memref.load %arg4[%c3_140, %c5_141] : memref<4x6xf32, #tpu.memory_space<smem>>
    %c0_142 = arith.constant 0 : index
    %78 = memref.load %arg5[%c0_142] : memref<4xf32, #tpu.memory_space<smem>>
    %c1_143 = arith.constant 1 : index
    %79 = memref.load %arg5[%c1_143] : memref<4xf32, #tpu.memory_space<smem>>
    %c2_144 = arith.constant 2 : index
    %80 = memref.load %arg5[%c2_144] : memref<4xf32, #tpu.memory_space<smem>>
    %c3_145 = arith.constant 3 : index
    %81 = memref.load %arg5[%c3_145] : memref<4xf32, #tpu.memory_space<smem>>
    %c0_146 = arith.constant 0 : index
    %c0_147 = arith.constant 0 : index
    %82 = memref.load %arg6[%c0_146, %c0_147] : memref<2x4xf32, #tpu.memory_space<smem>>
    %c0_148 = arith.constant 0 : index
    %c1_149 = arith.constant 1 : index
    %83 = memref.load %arg6[%c0_148, %c1_149] : memref<2x4xf32, #tpu.memory_space<smem>>
    %c0_150 = arith.constant 0 : index
    %c2_151 = arith.constant 2 : index
    %84 = memref.load %arg6[%c0_150, %c2_151] : memref<2x4xf32, #tpu.memory_space<smem>>
    %c0_152 = arith.constant 0 : index
    %c3_153 = arith.constant 3 : index
    %85 = memref.load %arg6[%c0_152, %c3_153] : memref<2x4xf32, #tpu.memory_space<smem>>
    %c1_154 = arith.constant 1 : index
    %c0_155 = arith.constant 0 : index
    %86 = memref.load %arg6[%c1_154, %c0_155] : memref<2x4xf32, #tpu.memory_space<smem>>
    %c1_156 = arith.constant 1 : index
    %c1_157 = arith.constant 1 : index
    %87 = memref.load %arg6[%c1_156, %c1_157] : memref<2x4xf32, #tpu.memory_space<smem>>
    %c1_158 = arith.constant 1 : index
    %c2_159 = arith.constant 2 : index
    %88 = memref.load %arg6[%c1_158, %c2_159] : memref<2x4xf32, #tpu.memory_space<smem>>
    %c1_160 = arith.constant 1 : index
    %c3_161 = arith.constant 3 : index
    %89 = memref.load %arg6[%c1_160, %c3_161] : memref<2x4xf32, #tpu.memory_space<smem>>
    %c0_162 = arith.constant 0 : index
    %90 = memref.load %arg7[%c0_162] : memref<2xf32, #tpu.memory_space<smem>>
    %c1_163 = arith.constant 1 : index
    %91 = memref.load %arg7[%c1_163] : memref<2xf32, #tpu.memory_space<smem>>
    %c0_164 = arith.constant 0 : index
    %c0_165 = arith.constant 0 : index
    %92 = memref.load %arg8[%c0_164, %c0_165] : memref<1x2xf32, #tpu.memory_space<smem>>
    %c0_166 = arith.constant 0 : index
    %c1_167 = arith.constant 1 : index
    %93 = memref.load %arg8[%c0_166, %c1_167] : memref<1x2xf32, #tpu.memory_space<smem>>
    %c0_168 = arith.constant 0 : index
    %94 = memref.load %arg9[%c0_168] : memref<1xf32, #tpu.memory_space<smem>>
    %c0_i32 = arith.constant 0 : i32
    %c8_i32 = arith.constant 8 : i32
    %95 = arith.muli %c0_i32, %c8_i32 : i32
    %96 = tpu.assume_multiple %95, 8 : i32
    %c0_169 = arith.constant 0 : index
    %97 = arith.index_cast %96 : i32 to index
    %c0_170 = arith.constant 0 : index
    %98 = vector.load %arg1[%c0_169, %97, %c0_170] : memref<8x8x128xf32, #tpu.memory_space<vmem>>, vector<1x8x128xf32>
    %99 = vector.shape_cast %98 : vector<1x8x128xf32> to vector<8x128xf32>
    %c1_171 = arith.constant 1 : index
    %100 = arith.index_cast %96 : i32 to index
    %c0_172 = arith.constant 0 : index
    %101 = vector.load %arg1[%c1_171, %100, %c0_172] : memref<8x8x128xf32, #tpu.memory_space<vmem>>, vector<1x8x128xf32>
    %102 = vector.shape_cast %101 : vector<1x8x128xf32> to vector<8x128xf32>
    %c2_173 = arith.constant 2 : index
    %103 = arith.index_cast %96 : i32 to index
    %c0_174 = arith.constant 0 : index
    %104 = vector.load %arg1[%c2_173, %103, %c0_174] : memref<8x8x128xf32, #tpu.memory_space<vmem>>, vector<1x8x128xf32>
    %105 = vector.shape_cast %104 : vector<1x8x128xf32> to vector<8x128xf32>
    %c3_175 = arith.constant 3 : index
    %106 = arith.index_cast %96 : i32 to index
    %c0_176 = arith.constant 0 : index
    %107 = vector.load %arg1[%c3_175, %106, %c0_176] : memref<8x8x128xf32, #tpu.memory_space<vmem>>, vector<1x8x128xf32>
    %108 = vector.shape_cast %107 : vector<1x8x128xf32> to vector<8x128xf32>
    %c4_177 = arith.constant 4 : index
    %109 = arith.index_cast %96 : i32 to index
    %c0_178 = arith.constant 0 : index
    %110 = vector.load %arg1[%c4_177, %109, %c0_178] : memref<8x8x128xf32, #tpu.memory_space<vmem>>, vector<1x8x128xf32>
    %111 = vector.shape_cast %110 : vector<1x8x128xf32> to vector<8x128xf32>
    %c5_179 = arith.constant 5 : index
    %112 = arith.index_cast %96 : i32 to index
    %c0_180 = arith.constant 0 : index
    %113 = vector.load %arg1[%c5_179, %112, %c0_180] : memref<8x8x128xf32, #tpu.memory_space<vmem>>, vector<1x8x128xf32>
    %114 = vector.shape_cast %113 : vector<1x8x128xf32> to vector<8x128xf32>
    %c6_181 = arith.constant 6 : index
    %115 = arith.index_cast %96 : i32 to index
    %c0_182 = arith.constant 0 : index
    %116 = vector.load %arg1[%c6_181, %115, %c0_182] : memref<8x8x128xf32, #tpu.memory_space<vmem>>, vector<1x8x128xf32>
    %117 = vector.shape_cast %116 : vector<1x8x128xf32> to vector<8x128xf32>
    %c7_183 = arith.constant 7 : index
    %118 = arith.index_cast %96 : i32 to index
    %c0_184 = arith.constant 0 : index
    %119 = vector.load %arg1[%c7_183, %118, %c0_184] : memref<8x8x128xf32, #tpu.memory_space<vmem>>, vector<1x8x128xf32>
    %120 = vector.shape_cast %119 : vector<1x8x128xf32> to vector<8x128xf32>
    %121 = vector.broadcast %0 : f32 to vector<8x128xf32>
    %122 = arith.mulf %99, %121 : vector<8x128xf32>
    %123 = vector.broadcast %1 : f32 to vector<8x128xf32>
    %124 = arith.mulf %102, %123 : vector<8x128xf32>
    %125 = arith.addf %122, %124 : vector<8x128xf32>
    %126 = vector.broadcast %2 : f32 to vector<8x128xf32>
    %127 = arith.mulf %105, %126 : vector<8x128xf32>
    %128 = arith.addf %125, %127 : vector<8x128xf32>
    %129 = vector.broadcast %3 : f32 to vector<8x128xf32>
    %130 = arith.mulf %108, %129 : vector<8x128xf32>
    %131 = arith.addf %128, %130 : vector<8x128xf32>
    %132 = vector.broadcast %4 : f32 to vector<8x128xf32>
    %133 = arith.mulf %111, %132 : vector<8x128xf32>
    %134 = arith.addf %131, %133 : vector<8x128xf32>
    %135 = vector.broadcast %5 : f32 to vector<8x128xf32>
    %136 = arith.mulf %114, %135 : vector<8x128xf32>
    %137 = arith.addf %134, %136 : vector<8x128xf32>
    %138 = vector.broadcast %6 : f32 to vector<8x128xf32>
    %139 = arith.mulf %117, %138 : vector<8x128xf32>
    %140 = arith.addf %137, %139 : vector<8x128xf32>
    %141 = vector.broadcast %7 : f32 to vector<8x128xf32>
    %142 = arith.mulf %120, %141 : vector<8x128xf32>
    %143 = arith.addf %140, %142 : vector<8x128xf32>
    %144 = vector.broadcast %48 : f32 to vector<8x128xf32>
    %145 = arith.addf %143, %144 : vector<8x128xf32>
    %146 = math.absf %145 : vector<8x128xf32>
    %cst = arith.constant 0.000000e+00 : f32
    %147 = vector.broadcast %cst : f32 to vector<8x128xf32>
    %148 = arith.subf %147, %146 : vector<8x128xf32>
    %149 = math.exp %148 : vector<8x128xf32>
    %cst_185 = arith.constant 0.000000e+00 : f32
    %150 = vector.broadcast %cst_185 : f32 to vector<8x128xf32>
    %151 = arith.cmpf oge, %145, %150 : vector<8x128xf32>
    %cst_186 = arith.constant 1.000000e+00 : f32
    %152 = vector.broadcast %cst_186 : f32 to vector<8x128xf32>
    %153 = arith.select %151, %152, %149 : vector<8x128xi1>, vector<8x128xf32>
    %cst_187 = arith.constant 1.000000e+00 : f32
    %154 = vector.broadcast %cst_187 : f32 to vector<8x128xf32>
    %155 = arith.addf %154, %149 : vector<8x128xf32>
    %156 = tpu.reciprocal %155 : vector<8x128xf32> -> vector<8x128xf32>
    %157 = arith.mulf %153, %156 : vector<8x128xf32>
    %158 = vector.broadcast %8 : f32 to vector<8x128xf32>
    %159 = arith.mulf %99, %158 : vector<8x128xf32>
    %160 = vector.broadcast %9 : f32 to vector<8x128xf32>
    %161 = arith.mulf %102, %160 : vector<8x128xf32>
    %162 = arith.addf %159, %161 : vector<8x128xf32>
    %163 = vector.broadcast %10 : f32 to vector<8x128xf32>
    %164 = arith.mulf %105, %163 : vector<8x128xf32>
    %165 = arith.addf %162, %164 : vector<8x128xf32>
    %166 = vector.broadcast %11 : f32 to vector<8x128xf32>
    %167 = arith.mulf %108, %166 : vector<8x128xf32>
    %168 = arith.addf %165, %167 : vector<8x128xf32>
    %169 = vector.broadcast %12 : f32 to vector<8x128xf32>
    %170 = arith.mulf %111, %169 : vector<8x128xf32>
    %171 = arith.addf %168, %170 : vector<8x128xf32>
    %172 = vector.broadcast %13 : f32 to vector<8x128xf32>
    %173 = arith.mulf %114, %172 : vector<8x128xf32>
    %174 = arith.addf %171, %173 : vector<8x128xf32>
    %175 = vector.broadcast %14 : f32 to vector<8x128xf32>
    %176 = arith.mulf %117, %175 : vector<8x128xf32>
    %177 = arith.addf %174, %176 : vector<8x128xf32>
    %178 = vector.broadcast %15 : f32 to vector<8x128xf32>
    %179 = arith.mulf %120, %178 : vector<8x128xf32>
    %180 = arith.addf %177, %179 : vector<8x128xf32>
    %181 = vector.broadcast %49 : f32 to vector<8x128xf32>
    %182 = arith.addf %180, %181 : vector<8x128xf32>
    %183 = math.absf %182 : vector<8x128xf32>
    %cst_188 = arith.constant 0.000000e+00 : f32
    %184 = vector.broadcast %cst_188 : f32 to vector<8x128xf32>
    %185 = arith.subf %184, %183 : vector<8x128xf32>
    %186 = math.exp %185 : vector<8x128xf32>
    %cst_189 = arith.constant 0.000000e+00 : f32
    %187 = vector.broadcast %cst_189 : f32 to vector<8x128xf32>
    %188 = arith.cmpf oge, %182, %187 : vector<8x128xf32>
    %cst_190 = arith.constant 1.000000e+00 : f32
    %189 = vector.broadcast %cst_190 : f32 to vector<8x128xf32>
    %190 = arith.select %188, %189, %186 : vector<8x128xi1>, vector<8x128xf32>
    %cst_191 = arith.constant 1.000000e+00 : f32
    %191 = vector.broadcast %cst_191 : f32 to vector<8x128xf32>
    %192 = arith.addf %191, %186 : vector<8x128xf32>
    %193 = tpu.reciprocal %192 : vector<8x128xf32> -> vector<8x128xf32>
    %194 = arith.mulf %190, %193 : vector<8x128xf32>
    %195 = vector.broadcast %16 : f32 to vector<8x128xf32>
    %196 = arith.mulf %99, %195 : vector<8x128xf32>
    %197 = vector.broadcast %17 : f32 to vector<8x128xf32>
    %198 = arith.mulf %102, %197 : vector<8x128xf32>
    %199 = arith.addf %196, %198 : vector<8x128xf32>
    %200 = vector.broadcast %18 : f32 to vector<8x128xf32>
    %201 = arith.mulf %105, %200 : vector<8x128xf32>
    %202 = arith.addf %199, %201 : vector<8x128xf32>
    %203 = vector.broadcast %19 : f32 to vector<8x128xf32>
    %204 = arith.mulf %108, %203 : vector<8x128xf32>
    %205 = arith.addf %202, %204 : vector<8x128xf32>
    %206 = vector.broadcast %20 : f32 to vector<8x128xf32>
    %207 = arith.mulf %111, %206 : vector<8x128xf32>
    %208 = arith.addf %205, %207 : vector<8x128xf32>
    %209 = vector.broadcast %21 : f32 to vector<8x128xf32>
    %210 = arith.mulf %114, %209 : vector<8x128xf32>
    %211 = arith.addf %208, %210 : vector<8x128xf32>
    %212 = vector.broadcast %22 : f32 to vector<8x128xf32>
    %213 = arith.mulf %117, %212 : vector<8x128xf32>
    %214 = arith.addf %211, %213 : vector<8x128xf32>
    %215 = vector.broadcast %23 : f32 to vector<8x128xf32>
    %216 = arith.mulf %120, %215 : vector<8x128xf32>
    %217 = arith.addf %214, %216 : vector<8x128xf32>
    %218 = vector.broadcast %50 : f32 to vector<8x128xf32>
    %219 = arith.addf %217, %218 : vector<8x128xf32>
    %220 = math.absf %219 : vector<8x128xf32>
    %cst_192 = arith.constant 0.000000e+00 : f32
    %221 = vector.broadcast %cst_192 : f32 to vector<8x128xf32>
    %222 = arith.subf %221, %220 : vector<8x128xf32>
    %223 = math.exp %222 : vector<8x128xf32>
    %cst_193 = arith.constant 0.000000e+00 : f32
    %224 = vector.broadcast %cst_193 : f32 to vector<8x128xf32>
    %225 = arith.cmpf oge, %219, %224 : vector<8x128xf32>
    %cst_194 = arith.constant 1.000000e+00 : f32
    %226 = vector.broadcast %cst_194 : f32 to vector<8x128xf32>
    %227 = arith.select %225, %226, %223 : vector<8x128xi1>, vector<8x128xf32>
    %cst_195 = arith.constant 1.000000e+00 : f32
    %228 = vector.broadcast %cst_195 : f32 to vector<8x128xf32>
    %229 = arith.addf %228, %223 : vector<8x128xf32>
    %230 = tpu.reciprocal %229 : vector<8x128xf32> -> vector<8x128xf32>
    %231 = arith.mulf %227, %230 : vector<8x128xf32>
    %232 = vector.broadcast %24 : f32 to vector<8x128xf32>
    %233 = arith.mulf %99, %232 : vector<8x128xf32>
    %234 = vector.broadcast %25 : f32 to vector<8x128xf32>
    %235 = arith.mulf %102, %234 : vector<8x128xf32>
    %236 = arith.addf %233, %235 : vector<8x128xf32>
    %237 = vector.broadcast %26 : f32 to vector<8x128xf32>
    %238 = arith.mulf %105, %237 : vector<8x128xf32>
    %239 = arith.addf %236, %238 : vector<8x128xf32>
    %240 = vector.broadcast %27 : f32 to vector<8x128xf32>
    %241 = arith.mulf %108, %240 : vector<8x128xf32>
    %242 = arith.addf %239, %241 : vector<8x128xf32>
    %243 = vector.broadcast %28 : f32 to vector<8x128xf32>
    %244 = arith.mulf %111, %243 : vector<8x128xf32>
    %245 = arith.addf %242, %244 : vector<8x128xf32>
    %246 = vector.broadcast %29 : f32 to vector<8x128xf32>
    %247 = arith.mulf %114, %246 : vector<8x128xf32>
    %248 = arith.addf %245, %247 : vector<8x128xf32>
    %249 = vector.broadcast %30 : f32 to vector<8x128xf32>
    %250 = arith.mulf %117, %249 : vector<8x128xf32>
    %251 = arith.addf %248, %250 : vector<8x128xf32>
    %252 = vector.broadcast %31 : f32 to vector<8x128xf32>
    %253 = arith.mulf %120, %252 : vector<8x128xf32>
    %254 = arith.addf %251, %253 : vector<8x128xf32>
    %255 = vector.broadcast %51 : f32 to vector<8x128xf32>
    %256 = arith.addf %254, %255 : vector<8x128xf32>
    %257 = math.absf %256 : vector<8x128xf32>
    %cst_196 = arith.constant 0.000000e+00 : f32
    %258 = vector.broadcast %cst_196 : f32 to vector<8x128xf32>
    %259 = arith.subf %258, %257 : vector<8x128xf32>
    %260 = math.exp %259 : vector<8x128xf32>
    %cst_197 = arith.constant 0.000000e+00 : f32
    %261 = vector.broadcast %cst_197 : f32 to vector<8x128xf32>
    %262 = arith.cmpf oge, %256, %261 : vector<8x128xf32>
    %cst_198 = arith.constant 1.000000e+00 : f32
    %263 = vector.broadcast %cst_198 : f32 to vector<8x128xf32>
    %264 = arith.select %262, %263, %260 : vector<8x128xi1>, vector<8x128xf32>
    %cst_199 = arith.constant 1.000000e+00 : f32
    %265 = vector.broadcast %cst_199 : f32 to vector<8x128xf32>
    %266 = arith.addf %265, %260 : vector<8x128xf32>
    %267 = tpu.reciprocal %266 : vector<8x128xf32> -> vector<8x128xf32>
    %268 = arith.mulf %264, %267 : vector<8x128xf32>
    %269 = vector.broadcast %32 : f32 to vector<8x128xf32>
    %270 = arith.mulf %99, %269 : vector<8x128xf32>
    %271 = vector.broadcast %33 : f32 to vector<8x128xf32>
    %272 = arith.mulf %102, %271 : vector<8x128xf32>
    %273 = arith.addf %270, %272 : vector<8x128xf32>
    %274 = vector.broadcast %34 : f32 to vector<8x128xf32>
    %275 = arith.mulf %105, %274 : vector<8x128xf32>
    %276 = arith.addf %273, %275 : vector<8x128xf32>
    %277 = vector.broadcast %35 : f32 to vector<8x128xf32>
    %278 = arith.mulf %108, %277 : vector<8x128xf32>
    %279 = arith.addf %276, %278 : vector<8x128xf32>
    %280 = vector.broadcast %36 : f32 to vector<8x128xf32>
    %281 = arith.mulf %111, %280 : vector<8x128xf32>
    %282 = arith.addf %279, %281 : vector<8x128xf32>
    %283 = vector.broadcast %37 : f32 to vector<8x128xf32>
    %284 = arith.mulf %114, %283 : vector<8x128xf32>
    %285 = arith.addf %282, %284 : vector<8x128xf32>
    %286 = vector.broadcast %38 : f32 to vector<8x128xf32>
    %287 = arith.mulf %117, %286 : vector<8x128xf32>
    %288 = arith.addf %285, %287 : vector<8x128xf32>
    %289 = vector.broadcast %39 : f32 to vector<8x128xf32>
    %290 = arith.mulf %120, %289 : vector<8x128xf32>
    %291 = arith.addf %288, %290 : vector<8x128xf32>
    %292 = vector.broadcast %52 : f32 to vector<8x128xf32>
    %293 = arith.addf %291, %292 : vector<8x128xf32>
    %294 = math.absf %293 : vector<8x128xf32>
    %cst_200 = arith.constant 0.000000e+00 : f32
    %295 = vector.broadcast %cst_200 : f32 to vector<8x128xf32>
    %296 = arith.subf %295, %294 : vector<8x128xf32>
    %297 = math.exp %296 : vector<8x128xf32>
    %cst_201 = arith.constant 0.000000e+00 : f32
    %298 = vector.broadcast %cst_201 : f32 to vector<8x128xf32>
    %299 = arith.cmpf oge, %293, %298 : vector<8x128xf32>
    %cst_202 = arith.constant 1.000000e+00 : f32
    %300 = vector.broadcast %cst_202 : f32 to vector<8x128xf32>
    %301 = arith.select %299, %300, %297 : vector<8x128xi1>, vector<8x128xf32>
    %cst_203 = arith.constant 1.000000e+00 : f32
    %302 = vector.broadcast %cst_203 : f32 to vector<8x128xf32>
    %303 = arith.addf %302, %297 : vector<8x128xf32>
    %304 = tpu.reciprocal %303 : vector<8x128xf32> -> vector<8x128xf32>
    %305 = arith.mulf %301, %304 : vector<8x128xf32>
    %306 = vector.broadcast %40 : f32 to vector<8x128xf32>
    %307 = arith.mulf %99, %306 : vector<8x128xf32>
    %308 = vector.broadcast %41 : f32 to vector<8x128xf32>
    %309 = arith.mulf %102, %308 : vector<8x128xf32>
    %310 = arith.addf %307, %309 : vector<8x128xf32>
    %311 = vector.broadcast %42 : f32 to vector<8x128xf32>
    %312 = arith.mulf %105, %311 : vector<8x128xf32>
    %313 = arith.addf %310, %312 : vector<8x128xf32>
    %314 = vector.broadcast %43 : f32 to vector<8x128xf32>
    %315 = arith.mulf %108, %314 : vector<8x128xf32>
    %316 = arith.addf %313, %315 : vector<8x128xf32>
    %317 = vector.broadcast %44 : f32 to vector<8x128xf32>
    %318 = arith.mulf %111, %317 : vector<8x128xf32>
    %319 = arith.addf %316, %318 : vector<8x128xf32>
    %320 = vector.broadcast %45 : f32 to vector<8x128xf32>
    %321 = arith.mulf %114, %320 : vector<8x128xf32>
    %322 = arith.addf %319, %321 : vector<8x128xf32>
    %323 = vector.broadcast %46 : f32 to vector<8x128xf32>
    %324 = arith.mulf %117, %323 : vector<8x128xf32>
    %325 = arith.addf %322, %324 : vector<8x128xf32>
    %326 = vector.broadcast %47 : f32 to vector<8x128xf32>
    %327 = arith.mulf %120, %326 : vector<8x128xf32>
    %328 = arith.addf %325, %327 : vector<8x128xf32>
    %329 = vector.broadcast %53 : f32 to vector<8x128xf32>
    %330 = arith.addf %328, %329 : vector<8x128xf32>
    %331 = math.absf %330 : vector<8x128xf32>
    %cst_204 = arith.constant 0.000000e+00 : f32
    %332 = vector.broadcast %cst_204 : f32 to vector<8x128xf32>
    %333 = arith.subf %332, %331 : vector<8x128xf32>
    %334 = math.exp %333 : vector<8x128xf32>
    %cst_205 = arith.constant 0.000000e+00 : f32
    %335 = vector.broadcast %cst_205 : f32 to vector<8x128xf32>
    %336 = arith.cmpf oge, %330, %335 : vector<8x128xf32>
    %cst_206 = arith.constant 1.000000e+00 : f32
    %337 = vector.broadcast %cst_206 : f32 to vector<8x128xf32>
    %338 = arith.select %336, %337, %334 : vector<8x128xi1>, vector<8x128xf32>
    %cst_207 = arith.constant 1.000000e+00 : f32
    %339 = vector.broadcast %cst_207 : f32 to vector<8x128xf32>
    %340 = arith.addf %339, %334 : vector<8x128xf32>
    %341 = tpu.reciprocal %340 : vector<8x128xf32> -> vector<8x128xf32>
    %342 = arith.mulf %338, %341 : vector<8x128xf32>
    %343 = vector.broadcast %54 : f32 to vector<8x128xf32>
    %344 = arith.mulf %157, %343 : vector<8x128xf32>
    %345 = vector.broadcast %55 : f32 to vector<8x128xf32>
    %346 = arith.mulf %194, %345 : vector<8x128xf32>
    %347 = arith.addf %344, %346 : vector<8x128xf32>
    %348 = vector.broadcast %56 : f32 to vector<8x128xf32>
    %349 = arith.mulf %231, %348 : vector<8x128xf32>
    %350 = arith.addf %347, %349 : vector<8x128xf32>
    %351 = vector.broadcast %57 : f32 to vector<8x128xf32>
    %352 = arith.mulf %268, %351 : vector<8x128xf32>
    %353 = arith.addf %350, %352 : vector<8x128xf32>
    %354 = vector.broadcast %58 : f32 to vector<8x128xf32>
    %355 = arith.mulf %305, %354 : vector<8x128xf32>
    %356 = arith.addf %353, %355 : vector<8x128xf32>
    %357 = vector.broadcast %59 : f32 to vector<8x128xf32>
    %358 = arith.mulf %342, %357 : vector<8x128xf32>
    %359 = arith.addf %356, %358 : vector<8x128xf32>
    %360 = vector.broadcast %78 : f32 to vector<8x128xf32>
    %361 = arith.addf %359, %360 : vector<8x128xf32>
    %362 = math.absf %361 : vector<8x128xf32>
    %cst_208 = arith.constant 0.000000e+00 : f32
    %363 = vector.broadcast %cst_208 : f32 to vector<8x128xf32>
    %364 = arith.subf %363, %362 : vector<8x128xf32>
    %365 = math.exp %364 : vector<8x128xf32>
    %cst_209 = arith.constant 0.000000e+00 : f32
    %366 = vector.broadcast %cst_209 : f32 to vector<8x128xf32>
    %367 = arith.cmpf oge, %361, %366 : vector<8x128xf32>
    %cst_210 = arith.constant 1.000000e+00 : f32
    %368 = vector.broadcast %cst_210 : f32 to vector<8x128xf32>
    %369 = arith.select %367, %368, %365 : vector<8x128xi1>, vector<8x128xf32>
    %cst_211 = arith.constant 1.000000e+00 : f32
    %370 = vector.broadcast %cst_211 : f32 to vector<8x128xf32>
    %371 = arith.addf %370, %365 : vector<8x128xf32>
    %372 = tpu.reciprocal %371 : vector<8x128xf32> -> vector<8x128xf32>
    %373 = arith.mulf %369, %372 : vector<8x128xf32>
    %374 = vector.broadcast %60 : f32 to vector<8x128xf32>
    %375 = arith.mulf %157, %374 : vector<8x128xf32>
    %376 = vector.broadcast %61 : f32 to vector<8x128xf32>
    %377 = arith.mulf %194, %376 : vector<8x128xf32>
    %378 = arith.addf %375, %377 : vector<8x128xf32>
    %379 = vector.broadcast %62 : f32 to vector<8x128xf32>
    %380 = arith.mulf %231, %379 : vector<8x128xf32>
    %381 = arith.addf %378, %380 : vector<8x128xf32>
    %382 = vector.broadcast %63 : f32 to vector<8x128xf32>
    %383 = arith.mulf %268, %382 : vector<8x128xf32>
    %384 = arith.addf %381, %383 : vector<8x128xf32>
    %385 = vector.broadcast %64 : f32 to vector<8x128xf32>
    %386 = arith.mulf %305, %385 : vector<8x128xf32>
    %387 = arith.addf %384, %386 : vector<8x128xf32>
    %388 = vector.broadcast %65 : f32 to vector<8x128xf32>
    %389 = arith.mulf %342, %388 : vector<8x128xf32>
    %390 = arith.addf %387, %389 : vector<8x128xf32>
    %391 = vector.broadcast %79 : f32 to vector<8x128xf32>
    %392 = arith.addf %390, %391 : vector<8x128xf32>
    %393 = math.absf %392 : vector<8x128xf32>
    %cst_212 = arith.constant 0.000000e+00 : f32
    %394 = vector.broadcast %cst_212 : f32 to vector<8x128xf32>
    %395 = arith.subf %394, %393 : vector<8x128xf32>
    %396 = math.exp %395 : vector<8x128xf32>
    %cst_213 = arith.constant 0.000000e+00 : f32
    %397 = vector.broadcast %cst_213 : f32 to vector<8x128xf32>
    %398 = arith.cmpf oge, %392, %397 : vector<8x128xf32>
    %cst_214 = arith.constant 1.000000e+00 : f32
    %399 = vector.broadcast %cst_214 : f32 to vector<8x128xf32>
    %400 = arith.select %398, %399, %396 : vector<8x128xi1>, vector<8x128xf32>
    %cst_215 = arith.constant 1.000000e+00 : f32
    %401 = vector.broadcast %cst_215 : f32 to vector<8x128xf32>
    %402 = arith.addf %401, %396 : vector<8x128xf32>
    %403 = tpu.reciprocal %402 : vector<8x128xf32> -> vector<8x128xf32>
    %404 = arith.mulf %400, %403 : vector<8x128xf32>
    %405 = vector.broadcast %66 : f32 to vector<8x128xf32>
    %406 = arith.mulf %157, %405 : vector<8x128xf32>
    %407 = vector.broadcast %67 : f32 to vector<8x128xf32>
    %408 = arith.mulf %194, %407 : vector<8x128xf32>
    %409 = arith.addf %406, %408 : vector<8x128xf32>
    %410 = vector.broadcast %68 : f32 to vector<8x128xf32>
    %411 = arith.mulf %231, %410 : vector<8x128xf32>
    %412 = arith.addf %409, %411 : vector<8x128xf32>
    %413 = vector.broadcast %69 : f32 to vector<8x128xf32>
    %414 = arith.mulf %268, %413 : vector<8x128xf32>
    %415 = arith.addf %412, %414 : vector<8x128xf32>
    %416 = vector.broadcast %70 : f32 to vector<8x128xf32>
    %417 = arith.mulf %305, %416 : vector<8x128xf32>
    %418 = arith.addf %415, %417 : vector<8x128xf32>
    %419 = vector.broadcast %71 : f32 to vector<8x128xf32>
    %420 = arith.mulf %342, %419 : vector<8x128xf32>
    %421 = arith.addf %418, %420 : vector<8x128xf32>
    %422 = vector.broadcast %80 : f32 to vector<8x128xf32>
    %423 = arith.addf %421, %422 : vector<8x128xf32>
    %424 = math.absf %423 : vector<8x128xf32>
    %cst_216 = arith.constant 0.000000e+00 : f32
    %425 = vector.broadcast %cst_216 : f32 to vector<8x128xf32>
    %426 = arith.subf %425, %424 : vector<8x128xf32>
    %427 = math.exp %426 : vector<8x128xf32>
    %cst_217 = arith.constant 0.000000e+00 : f32
    %428 = vector.broadcast %cst_217 : f32 to vector<8x128xf32>
    %429 = arith.cmpf oge, %423, %428 : vector<8x128xf32>
    %cst_218 = arith.constant 1.000000e+00 : f32
    %430 = vector.broadcast %cst_218 : f32 to vector<8x128xf32>
    %431 = arith.select %429, %430, %427 : vector<8x128xi1>, vector<8x128xf32>
    %cst_219 = arith.constant 1.000000e+00 : f32
    %432 = vector.broadcast %cst_219 : f32 to vector<8x128xf32>
    %433 = arith.addf %432, %427 : vector<8x128xf32>
    %434 = tpu.reciprocal %433 : vector<8x128xf32> -> vector<8x128xf32>
    %435 = arith.mulf %431, %434 : vector<8x128xf32>
    %436 = vector.broadcast %72 : f32 to vector<8x128xf32>
    %437 = arith.mulf %157, %436 : vector<8x128xf32>
    %438 = vector.broadcast %73 : f32 to vector<8x128xf32>
    %439 = arith.mulf %194, %438 : vector<8x128xf32>
    %440 = arith.addf %437, %439 : vector<8x128xf32>
    %441 = vector.broadcast %74 : f32 to vector<8x128xf32>
    %442 = arith.mulf %231, %441 : vector<8x128xf32>
    %443 = arith.addf %440, %442 : vector<8x128xf32>
    %444 = vector.broadcast %75 : f32 to vector<8x128xf32>
    %445 = arith.mulf %268, %444 : vector<8x128xf32>
    %446 = arith.addf %443, %445 : vector<8x128xf32>
    %447 = vector.broadcast %76 : f32 to vector<8x128xf32>
    %448 = arith.mulf %305, %447 : vector<8x128xf32>
    %449 = arith.addf %446, %448 : vector<8x128xf32>
    %450 = vector.broadcast %77 : f32 to vector<8x128xf32>
    %451 = arith.mulf %342, %450 : vector<8x128xf32>
    %452 = arith.addf %449, %451 : vector<8x128xf32>
    %453 = vector.broadcast %81 : f32 to vector<8x128xf32>
    %454 = arith.addf %452, %453 : vector<8x128xf32>
    %455 = math.absf %454 : vector<8x128xf32>
    %cst_220 = arith.constant 0.000000e+00 : f32
    %456 = vector.broadcast %cst_220 : f32 to vector<8x128xf32>
    %457 = arith.subf %456, %455 : vector<8x128xf32>
    %458 = math.exp %457 : vector<8x128xf32>
    %cst_221 = arith.constant 0.000000e+00 : f32
    %459 = vector.broadcast %cst_221 : f32 to vector<8x128xf32>
    %460 = arith.cmpf oge, %454, %459 : vector<8x128xf32>
    %cst_222 = arith.constant 1.000000e+00 : f32
    %461 = vector.broadcast %cst_222 : f32 to vector<8x128xf32>
    %462 = arith.select %460, %461, %458 : vector<8x128xi1>, vector<8x128xf32>
    %cst_223 = arith.constant 1.000000e+00 : f32
    %463 = vector.broadcast %cst_223 : f32 to vector<8x128xf32>
    %464 = arith.addf %463, %458 : vector<8x128xf32>
    %465 = tpu.reciprocal %464 : vector<8x128xf32> -> vector<8x128xf32>
    %466 = arith.mulf %462, %465 : vector<8x128xf32>
    %467 = vector.broadcast %82 : f32 to vector<8x128xf32>
    %468 = arith.mulf %373, %467 : vector<8x128xf32>
    %469 = vector.broadcast %83 : f32 to vector<8x128xf32>
    %470 = arith.mulf %404, %469 : vector<8x128xf32>
    %471 = arith.addf %468, %470 : vector<8x128xf32>
    %472 = vector.broadcast %84 : f32 to vector<8x128xf32>
    %473 = arith.mulf %435, %472 : vector<8x128xf32>
    %474 = arith.addf %471, %473 : vector<8x128xf32>
    %475 = vector.broadcast %85 : f32 to vector<8x128xf32>
    %476 = arith.mulf %466, %475 : vector<8x128xf32>
    %477 = arith.addf %474, %476 : vector<8x128xf32>
    %478 = vector.broadcast %90 : f32 to vector<8x128xf32>
    %479 = arith.addf %477, %478 : vector<8x128xf32>
    %480 = math.absf %479 : vector<8x128xf32>
    %cst_224 = arith.constant 0.000000e+00 : f32
    %481 = vector.broadcast %cst_224 : f32 to vector<8x128xf32>
    %482 = arith.subf %481, %480 : vector<8x128xf32>
    %483 = math.exp %482 : vector<8x128xf32>
    %cst_225 = arith.constant 0.000000e+00 : f32
    %484 = vector.broadcast %cst_225 : f32 to vector<8x128xf32>
    %485 = arith.cmpf oge, %479, %484 : vector<8x128xf32>
    %cst_226 = arith.constant 1.000000e+00 : f32
    %486 = vector.broadcast %cst_226 : f32 to vector<8x128xf32>
    %487 = arith.select %485, %486, %483 : vector<8x128xi1>, vector<8x128xf32>
    %cst_227 = arith.constant 1.000000e+00 : f32
    %488 = vector.broadcast %cst_227 : f32 to vector<8x128xf32>
    %489 = arith.addf %488, %483 : vector<8x128xf32>
    %490 = tpu.reciprocal %489 : vector<8x128xf32> -> vector<8x128xf32>
    %491 = arith.mulf %487, %490 : vector<8x128xf32>
    %492 = vector.broadcast %86 : f32 to vector<8x128xf32>
    %493 = arith.mulf %373, %492 : vector<8x128xf32>
    %494 = vector.broadcast %87 : f32 to vector<8x128xf32>
    %495 = arith.mulf %404, %494 : vector<8x128xf32>
    %496 = arith.addf %493, %495 : vector<8x128xf32>
    %497 = vector.broadcast %88 : f32 to vector<8x128xf32>
    %498 = arith.mulf %435, %497 : vector<8x128xf32>
    %499 = arith.addf %496, %498 : vector<8x128xf32>
    %500 = vector.broadcast %89 : f32 to vector<8x128xf32>
    %501 = arith.mulf %466, %500 : vector<8x128xf32>
    %502 = arith.addf %499, %501 : vector<8x128xf32>
    %503 = vector.broadcast %91 : f32 to vector<8x128xf32>
    %504 = arith.addf %502, %503 : vector<8x128xf32>
    %505 = math.absf %504 : vector<8x128xf32>
    %cst_228 = arith.constant 0.000000e+00 : f32
    %506 = vector.broadcast %cst_228 : f32 to vector<8x128xf32>
    %507 = arith.subf %506, %505 : vector<8x128xf32>
    %508 = math.exp %507 : vector<8x128xf32>
    %cst_229 = arith.constant 0.000000e+00 : f32
    %509 = vector.broadcast %cst_229 : f32 to vector<8x128xf32>
    %510 = arith.cmpf oge, %504, %509 : vector<8x128xf32>
    %cst_230 = arith.constant 1.000000e+00 : f32
    %511 = vector.broadcast %cst_230 : f32 to vector<8x128xf32>
    %512 = arith.select %510, %511, %508 : vector<8x128xi1>, vector<8x128xf32>
    %cst_231 = arith.constant 1.000000e+00 : f32
    %513 = vector.broadcast %cst_231 : f32 to vector<8x128xf32>
    %514 = arith.addf %513, %508 : vector<8x128xf32>
    %515 = tpu.reciprocal %514 : vector<8x128xf32> -> vector<8x128xf32>
    %516 = arith.mulf %512, %515 : vector<8x128xf32>
    %517 = vector.broadcast %92 : f32 to vector<8x128xf32>
    %518 = arith.mulf %491, %517 : vector<8x128xf32>
    %519 = vector.broadcast %93 : f32 to vector<8x128xf32>
    %520 = arith.mulf %516, %519 : vector<8x128xf32>
    %521 = arith.addf %518, %520 : vector<8x128xf32>
    %522 = vector.broadcast %94 : f32 to vector<8x128xf32>
    %523 = arith.addf %521, %522 : vector<8x128xf32>
    %524 = math.absf %523 : vector<8x128xf32>
    %cst_232 = arith.constant 0.000000e+00 : f32
    %525 = vector.broadcast %cst_232 : f32 to vector<8x128xf32>
    %526 = arith.subf %525, %524 : vector<8x128xf32>
    %527 = math.exp %526 : vector<8x128xf32>
    %cst_233 = arith.constant 0.000000e+00 : f32
    %528 = vector.broadcast %cst_233 : f32 to vector<8x128xf32>
    %529 = arith.cmpf oge, %523, %528 : vector<8x128xf32>
    %cst_234 = arith.constant 1.000000e+00 : f32
    %530 = vector.broadcast %cst_234 : f32 to vector<8x128xf32>
    %531 = arith.select %529, %530, %527 : vector<8x128xi1>, vector<8x128xf32>
    %cst_235 = arith.constant 1.000000e+00 : f32
    %532 = vector.broadcast %cst_235 : f32 to vector<8x128xf32>
    %533 = arith.addf %532, %527 : vector<8x128xf32>
    %534 = tpu.reciprocal %533 : vector<8x128xf32> -> vector<8x128xf32>
    %535 = arith.mulf %531, %534 : vector<8x128xf32>
    %536 = arith.index_cast %96 : i32 to index
    %c0_236 = arith.constant 0 : index
    %537 = vector.load %arg10[%536, %c0_236] : memref<8x128xf32, #tpu.memory_space<vmem>>, vector<8x128xf32>
    tpu.vector_store %arg10[%536, %c0_236], %535 {strides = array<i32>} : memref<8x128xf32, #tpu.memory_space<vmem>>, vector<8x128xf32>,
    %c1_i32 = arith.constant 1 : i32
    return
  }
  func.func @transform_0(%arg0: i32) -> (i32, i32, i32) {
    %c0_i32 = arith.constant 0 : i32
    %c0_i32_0 = arith.constant 0 : i32
    %c0_i32_1 = arith.constant 0 : i32
    return %c0_i32, %arg0, %c0_i32_0 : i32, i32, i32
  }
  func.func @transform_1(%arg0: i32) -> (i32, i32) {
    %c0_i32 = arith.constant 0 : i32
    %c0_i32_0 = arith.constant 0 : i32
    %c0_i32_1 = arith.constant 0 : i32
    return %c0_i32, %c0_i32_0 : i32, i32
  }
  func.func @transform_2(%arg0: i32) -> i32 {
    %c0_i32 = arith.constant 0 : i32
    %c0_i32_0 = arith.constant 0 : i32
    return %c0_i32 : i32
  }
  func.func @transform_3(%arg0: i32) -> (i32, i32) {
    %c0_i32 = arith.constant 0 : i32
    %c0_i32_0 = arith.constant 0 : i32
    %c0_i32_1 = arith.constant 0 : i32
    return %c0_i32, %c0_i32_0 : i32, i32
  }
  func.func @transform_4(%arg0: i32) -> i32 {
    %c0_i32 = arith.constant 0 : i32
    %c0_i32_0 = arith.constant 0 : i32
    return %c0_i32 : i32
  }
  func.func @transform_5(%arg0: i32) -> (i32, i32) {
    %c0_i32 = arith.constant 0 : i32
    %c0_i32_0 = arith.constant 0 : i32
    %c0_i32_1 = arith.constant 0 : i32
    return %c0_i32, %c0_i32_0 : i32, i32
  }
  func.func @transform_6(%arg0: i32) -> i32 {
    %c0_i32 = arith.constant 0 : i32
    %c0_i32_0 = arith.constant 0 : i32
    return %c0_i32 : i32
  }
  func.func @transform_7(%arg0: i32) -> (i32, i32) {
    %c0_i32 = arith.constant 0 : i32
    %c0_i32_0 = arith.constant 0 : i32
    %c0_i32_1 = arith.constant 0 : i32
    return %c0_i32, %c0_i32_0 : i32, i32
  }
  func.func @transform_8(%arg0: i32) -> i32 {
    %c0_i32 = arith.constant 0 : i32
    %c0_i32_0 = arith.constant 0 : i32
    return %c0_i32 : i32
  }
  func.func @transform_9(%arg0: i32) -> (i32, i32) {
    %c0_i32 = arith.constant 0 : i32
    %c0_i32_0 = arith.constant 0 : i32
    return %arg0, %c0_i32 : i32, i32
  }
}

</mosaic_0001>

<llo_original>
// kernel: tpu_custom_call.1
$region0: #{tpu_custom_call.1}
  #allocation0 [shape = 'u32[]', space=smem, size = 0x4, offset = 0x4, fixed_abs, tag = 'smem constant byte address 0x4 - core index']
  #allocation1 [shape = 'u32[144,128]{1,0:T(1,128)}', space=vmem, size = 0x12000, scoped, tag = 'internal scratch']
  #allocation2 [shape = 'f32[1]{0:T(128)S(6)}', space=smem, size = 0x200, scoped, tag = 'scoped memory for tpu_custom_call.1']
  %s0 = inlined_call_operand.hbm [shape: f32[8,8,128], index: 0, kind: input, shape index: {}]
  %s1 = inlined_call_operand.hbm [shape: f32[6,8], index: 1, kind: input, shape index: {}]
  %s2 = inlined_call_operand.vmem [shape: f32[6], index: 2, kind: input, shape index: {}]
  %s3 = inlined_call_operand.vmem [shape: f32[4,6], index: 3, kind: input, shape index: {}]
  %s4 = inlined_call_operand.vmem [shape: f32[4], index: 4, kind: input, shape index: {}]
  %s5 = inlined_call_operand.vmem [shape: f32[2,4], index: 5, kind: input, shape index: {}]
  %s6 = inlined_call_operand.vmem [shape: f32[2], index: 6, kind: input, shape index: {}]
  %s7 = inlined_call_operand.vmem [shape: f32[1,2], index: 7, kind: input, shape index: {}]
  %s8 = inlined_call_operand.<no memory space> [shape: f32[1], index: 8, kind: input, shape index: {}]
  %s9 = inlined_call_operand.hbm [shape: f32[8,128], index: 9, kind: output, shape index: {}]
  %s10 = sld [smem:[#allocation0]]
  $region78: #{tpu_custom_call.1} parent=0
    _
  %s12 = ssub.s32 1, %s10
  %s13 = scalar_select 0, %s12, %s10
  %14 = sst [smem:[#allocation2]] %s8
  $region1: #{tpu_custom_call.1} parent=0
    #allocation3 [shape = 'u8[32768]{0}', space=vmem, size = 0x8000, scoped, tag = 'input window, operand 0, single buffered']
    #allocation4 [shape = 's32[1]{0}', space=sflag, size = 0x4, scoped, tag = 'scoped memory for tpu_custom_call.1']
    #allocation5 [shape = 's32[1]{0}', space=sflag, size = 0x4, scoped, tag = 'scoped memory for tpu_custom_call.1']
    #allocation6 [shape = 's32[1]{0}', space=sflag, size = 0x4, scoped, tag = 'scoped memory for tpu_custom_call.1']
    #allocation7 [shape = 's32[1]{0}', space=sflag, size = 0x4, scoped, tag = 'scoped memory for tpu_custom_call.1']
    #allocation8 [shape = 'u8[4096]{0}', space=smem, size = 0x1000, scoped, tag = 'input window, operand 1, single buffered']
    #allocation9 [shape = 'u8[512]{0}', space=smem, size = 0x200, scoped, tag = 'input window, operand 2, single buffered']
    #allocation10 [shape = 'u8[2048]{0}', space=smem, size = 0x800, scoped, tag = 'input window, operand 3, single buffered']
    #allocation11 [shape = 's32[1]{0}', space=sflag, size = 0x4, scoped, tag = 'scoped memory for tpu_custom_call.1']
    #allocation12 [shape = 'u8[512]{0}', space=smem, size = 0x200, scoped, tag = 'input window, operand 4, single buffered']
    #allocation13 [shape = 'u8[1024]{0}', space=smem, size = 0x400, scoped, tag = 'input window, operand 5, single buffered']
    #allocation14 [shape = 's32[1]{0}', space=sflag, size = 0x4, scoped, tag = 'scoped memory for tpu_custom_call.1']
    #allocation15 [shape = 'u8[512]{0}', space=smem, size = 0x200, scoped, tag = 'input window, operand 6, single buffered']
    #allocation16 [shape = 'u8[512]{0}', space=smem, size = 0x200, scoped, tag = 'input window, operand 7, single buffered']
    #allocation17 [shape = 's32[1]{0}', space=sflag, size = 0x4, scoped, tag = 'scoped memory for tpu_custom_call.1']
    #allocation18 [shape = 'u8[4096]{0}', space=vmem, size = 0x1000, scoped, tag = 'output window, operand 0, single buffered']
    %15 = vsyncpa [#allocation4], 0
    %16 = vsyncpa [#allocation6], 0
    %17 = vsyncpa [#allocation7], 0
    %18 = vsyncpa [#allocation11], 0
    %19 = vsyncpa [#allocation14], 0
    %20 = vsyncpa [#allocation17], 0
    %21 = vsyncpa [#allocation5], 0
    // Predicated region
    $region2: #{tpu_custom_call.1} parent=1 // pred_check
      _
    $region3: #{tpu_custom_call.1} parent=1 // pred_check_branch
      %23 = sbr.rel (0) target = $region5
    $region4: #{tpu_custom_call.1} parent=1 // pred_region
      %s25 = ssub.s32 1024, 1024
      %26 = vsyncadd [#allocation4], %s25
      %s27 = sshll.u32 [#allocation3], 4
      %s28 = int_to_ptr.vmem [resolvable:$true] %s27
      %33 = dma.hbm_to_vmem [thread:$0]  %s0, 1024, %s28, [#allocation4], 128, 128, 8
    $region5: #{tpu_custom_call.1} parent=1 // pred_fallthru
      _
    // Predicated region
    $region6: #{tpu_custom_call.1} parent=1 // pred_check
      _
    $region7: #{tpu_custom_call.1} parent=1 // pred_check_branch
      %35 = sbr.rel (0) target = $region9
    $region8: #{tpu_custom_call.1} parent=1 // pred_region
      %s37 = ssub.s32 128, 128
      %38 = vsyncadd [#allocation6], %s37
      %41 = dma.hbm_to_smem %s1, 128, [#allocation8], [#allocation6]
    $region9: #{tpu_custom_call.1} parent=1 // pred_fallthru
      _
    // Predicated region
    $region10: #{tpu_custom_call.1} parent=1 // pred_check
      _
    $region11: #{tpu_custom_call.1} parent=1 // pred_check_branch
      %43 = sbr.rel (0) target = $region13
    $region12: #{tpu_custom_call.1} parent=1 // pred_region
      %s45 = ssub.s32 16, 16
      %46 = vsyncadd [#allocation7], %s45
      %s48 = sshll.u32 %s2, 4
      %s49 = int_to_ptr.vmem [resolvable:$true] %s48
      %51 = dma.vmem_to_smem %s49, 16, [#allocation9], [#allocation7]
    $region13: #{tpu_custom_call.1} parent=1 // pred_fallthru
      _
    // Predicated region
    $region14: #{tpu_custom_call.1} parent=1 // pred_check
      _
    $region15: #{tpu_custom_call.1} parent=1 // pred_check_branch
      %53 = sbr.rel (0) target = $region17
    $region16: #{tpu_custom_call.1} parent=1 // pred_region
      %s55 = ssub.s32 64, 64
      %56 = vsyncadd [#allocation11], %s55
      %s58 = sshll.u32 %s3, 4
      %s59 = int_to_ptr.vmem [resolvable:$true] %s58
      %61 = dma.vmem_to_smem %s59, 64, [#allocation10], [#allocation11]
    $region17: #{tpu_custom_call.1} parent=1 // pred_fallthru
      _
    // Predicated region
    $region18: #{tpu_custom_call.1} parent=1 // pred_check
      _
    $region19: #{tpu_custom_call.1} parent=1 // pred_check_branch
      %63 = sbr.rel (0) target = $region21
    $region20: #{tpu_custom_call.1} parent=1 // pred_region
      %s65 = ssub.s32 16, 16
      %66 = vsyncadd [#allocation11], %s65
      %s68 = sshll.u32 %s4, 4
      %s69 = int_to_ptr.vmem [resolvable:$true] %s68
      %71 = dma.vmem_to_smem %s69, 16, [#allocation12], [#allocation11]
    $region21: #{tpu_custom_call.1} parent=1 // pred_fallthru
      _
    // Predicated region
    $region22: #{tpu_custom_call.1} parent=1 // pred_check
      _
    $region23: #{tpu_custom_call.1} parent=1 // pred_check_branch
      %73 = sbr.rel (0) target = $region25
    $region24: #{tpu_custom_call.1} parent=1 // pred_region
      %s75 = ssub.s32 32, 32
      %76 = vsyncadd [#allocation14], %s75
      %s78 = sshll.u32 %s5, 4
      %s79 = int_to_ptr.vmem [resolvable:$true] %s78
      %81 = dma.vmem_to_smem %s79, 32, [#allocation13], [#allocation14]
    $region25: #{tpu_custom_call.1} parent=1 // pred_fallthru
      _
    // Predicated region
    $region26: #{tpu_custom_call.1} parent=1 // pred_check
      _
    $region27: #{tpu_custom_call.1} parent=1 // pred_check_branch
      %83 = sbr.rel (0) target = $region29
    $region28: #{tpu_custom_call.1} parent=1 // pred_region
      %s85 = ssub.s32 16, 16
      %86 = vsyncadd [#allocation14], %s85
      %s88 = sshll.u32 %s6, 4
      %s89 = int_to_ptr.vmem [resolvable:$true] %s88
      %91 = dma.vmem_to_smem %s89, 16, [#allocation15], [#allocation14]
    $region29: #{tpu_custom_call.1} parent=1 // pred_fallthru
      _
    // Predicated region
    $region30: #{tpu_custom_call.1} parent=1 // pred_check
      _
    $region31: #{tpu_custom_call.1} parent=1 // pred_check_branch
      %93 = sbr.rel (0) target = $region33
    $region32: #{tpu_custom_call.1} parent=1 // pred_region
      %s95 = ssub.s32 16, 16
      %96 = vsyncadd [#allocation17], %s95
      %s98 = sshll.u32 %s7, 4
      %s99 = int_to_ptr.vmem [resolvable:$true] %s98
      %101 = dma.vmem_to_smem %s99, 16, [#allocation16], [#allocation17]
    $region33: #{tpu_custom_call.1} parent=1 // pred_fallthru
      _
    // Predicated region
    $region34: #{tpu_custom_call.1} parent=1 // pred_check
      _
    $region35: #{tpu_custom_call.1} parent=1 // pred_check_branch
      %103 = sbr.rel (0) target = $region37
    $region36: #{tpu_custom_call.1} parent=1 // pred_region
      _
    $region37: #{tpu_custom_call.1} parent=1 // pred_fallthru
      _
    // Predicated region
    $region38: #{tpu_custom_call.1} parent=1 // pred_check
      _
    $region39: #{tpu_custom_call.1} parent=1 // pred_check_branch
      %105 = sbr.rel (0) target = $region41
    $region40: #{tpu_custom_call.1} parent=1 // pred_region
      %106 = dma.done [#allocation4], 1024
    $region41: #{tpu_custom_call.1} parent=1 // pred_fallthru
      _
    // Predicated region
    $region42: #{tpu_custom_call.1} parent=1 // pred_check
      _
    $region43: #{tpu_custom_call.1} parent=1 // pred_check_branch
      %108 = sbr.rel (0) target = $region45
    $region44: #{tpu_custom_call.1} parent=1 // pred_region
      %109 = dma.done [#allocation6], 128
    $region45: #{tpu_custom_call.1} parent=1 // pred_fallthru
      _
    // Predicated region
    $region46: #{tpu_custom_call.1} parent=1 // pred_check
      _
    $region47: #{tpu_custom_call.1} parent=1 // pred_check_branch
      %111 = sbr.rel (0) target = $region49
    $region48: #{tpu_custom_call.1} parent=1 // pred_region
      %112 = dma.done [#allocation7], 16
    $region49: #{tpu_custom_call.1} parent=1 // pred_fallthru
      _
    // Predicated region
    $region50: #{tpu_custom_call.1} parent=1 // pred_check
      _
    $region51: #{tpu_custom_call.1} parent=1 // pred_check_branch
      %114 = sbr.rel (0) target = $region53
    $region52: #{tpu_custom_call.1} parent=1 // pred_region
      %115 = dma.done [#allocation11], 64
    $region53: #{tpu_custom_call.1} parent=1 // pred_fallthru
      _
    // Predicated region
    $region54: #{tpu_custom_call.1} parent=1 // pred_check
      _
    $region55: #{tpu_custom_call.1} parent=1 // pred_check_branch
      %117 = sbr.rel (0) target = $region57
    $region56: #{tpu_custom_call.1} parent=1 // pred_region
      %118 = dma.done [#allocation11], 16
    $region57: #{tpu_custom_call.1} parent=1 // pred_fallthru
      _
    // Predicated region
    $region58: #{tpu_custom_call.1} parent=1 // pred_check
      _
    $region59: #{tpu_custom_call.1} parent=1 // pred_check_branch
      %120 = sbr.rel (0) target = $region61
    $region60: #{tpu_custom_call.1} parent=1 // pred_region
      %121 = dma.done [#allocation14], 32
    $region61: #{tpu_custom_call.1} parent=1 // pred_fallthru
      _
    // Predicated region
    $region62: #{tpu_custom_call.1} parent=1 // pred_check
      _
    $region63: #{tpu_custom_call.1} parent=1 // pred_check_branch
      %123 = sbr.rel (0) target = $region65
    $region64: #{tpu_custom_call.1} parent=1 // pred_region
      %124 = dma.done [#allocation14], 16
    $region65: #{tpu_custom_call.1} parent=1 // pred_fallthru
      _
    // Predicated region
    $region66: #{tpu_custom_call.1} parent=1 // pred_check
      _
    $region67: #{tpu_custom_call.1} parent=1 // pred_check_branch
      %126 = sbr.rel (0) target = $region69
    $region68: #{tpu_custom_call.1} parent=1 // pred_region
      %127 = dma.done [#allocation17], 16
    $region69: #{tpu_custom_call.1} parent=1 // pred_fallthru
      _
    %128 = sfence
    %s129 = sld [smem:[#allocation8]]
    %s130 = sld [smem:[#allocation8 + $0x1]]
    %s131 = sld [smem:[#allocation8 + $0x2]]
    %s132 = sld [smem:[#allocation8 + $0x3]]
    %s133 = sld [smem:[#allocation8 + $0x4]]
    %s134 = sld [smem:[#allocation8 + $0x5]]
    %s135 = sld [smem:[#allocation8 + $0x6]]
    %s136 = sld [smem:[#allocation8 + $0x7]]
    %s137 = sld [smem:[#allocation8 + $0x80]]
    %s138 = sld [smem:[#allocation8 + $0x81]]
    %s139 = sld [smem:[#allocation8 + $0x82]]
    %s140 = sld [smem:[#allocation8 + $0x83]]
    %s141 = sld [smem:[#allocation8 + $0x84]]
    %s142 = sld [smem:[#allocation8 + $0x85]]
    %s143 = sld [smem:[#allocation8 + $0x86]]
    %s144 = sld [smem:[#allocation8 + $0x87]]
    %s145 = sld [smem:[#allocation8 + $0x100]]
    %s146 = sld [smem:[#allocation8 + $0x101]]
    %s147 = sld [smem:[#allocation8 + $0x102]]
    %s148 = sld [smem:[#allocation8 + $0x103]]
    %s149 = sld [smem:[#allocation8 + $0x104]]
    %s150 = sld [smem:[#allocation8 + $0x105]]
    %s151 = sld [smem:[#allocation8 + $0x106]]
    %s152 = sld [smem:[#allocation8 + $0x107]]
    %s153 = sld [smem:[#allocation8 + $0x180]]
    %s154 = sld [smem:[#allocation8 + $0x181]]
    %s155 = sld [smem:[#allocation8 + $0x182]]
    %s156 = sld [smem:[#allocation8 + $0x183]]
    %s157 = sld [smem:[#allocation8 + $0x184]]
    %s158 = sld [smem:[#allocation8 + $0x185]]
    %s159 = sld [smem:[#allocation8 + $0x186]]
    %s160 = sld [smem:[#allocation8 + $0x187]]
    %s161 = sld [smem:[#allocation8 + $0x200]]
    %s162 = sld [smem:[#allocation8 + $0x201]]
    %s163 = sld [smem:[#allocation8 + $0x202]]
    %s164 = sld [smem:[#allocation8 + $0x203]]
    %s165 = sld [smem:[#allocation8 + $0x204]]
    %s166 = sld [smem:[#allocation8 + $0x205]]
    %s167 = sld [smem:[#allocation8 + $0x206]]
    %s168 = sld [smem:[#allocation8 + $0x207]]
    %s169 = sld [smem:[#allocation8 + $0x280]]
    %s170 = sld [smem:[#allocation8 + $0x281]]
    %s171 = sld [smem:[#allocation8 + $0x282]]
    %s172 = sld [smem:[#allocation8 + $0x283]]
    %s173 = sld [smem:[#allocation8 + $0x284]]
    %s174 = sld [smem:[#allocation8 + $0x285]]
    %s175 = sld [smem:[#allocation8 + $0x286]]
    %s176 = sld [smem:[#allocation8 + $0x287]]
    %s177 = sld [smem:[#allocation9]]
    %s178 = sld [smem:[#allocation9 + $0x1]]
    %s179 = sld [smem:[#allocation9 + $0x2]]
    %s180 = sld [smem:[#allocation9 + $0x3]]
    %s181 = sld [smem:[#allocation9 + $0x4]]
    %s182 = sld [smem:[#allocation9 + $0x5]]
    %s183 = sld [smem:[#allocation10]]
    %s184 = sld [smem:[#allocation10 + $0x1]]
    %s185 = sld [smem:[#allocation10 + $0x2]]
    %s186 = sld [smem:[#allocation10 + $0x3]]
    %s187 = sld [smem:[#allocation10 + $0x4]]
    %s188 = sld [smem:[#allocation10 + $0x5]]
    %s189 = sld [smem:[#allocation10 + $0x80]]
    %s190 = sld [smem:[#allocation10 + $0x81]]
    %s191 = sld [smem:[#allocation10 + $0x82]]
    %s192 = sld [smem:[#allocation10 + $0x83]]
    %s193 = sld [smem:[#allocation10 + $0x84]]
    %s194 = sld [smem:[#allocation10 + $0x85]]
    %s195 = sld [smem:[#allocation10 + $0x100]]
    %s196 = sld [smem:[#allocation10 + $0x101]]
    %s197 = sld [smem:[#allocation10 + $0x102]]
    %s198 = sld [smem:[#allocation10 + $0x103]]
    %s199 = sld [smem:[#allocation10 + $0x104]]
    %s200 = sld [smem:[#allocation10 + $0x105]]
    %s201 = sld [smem:[#allocation10 + $0x180]]
    %s202 = sld [smem:[#allocation10 + $0x181]]
    %s203 = sld [smem:[#allocation10 + $0x182]]
    %s204 = sld [smem:[#allocation10 + $0x183]]
    %s205 = sld [smem:[#allocation10 + $0x184]]
    %s206 = sld [smem:[#allocation10 + $0x185]]
    %s207 = sld [smem:[#allocation12]]
    %s208 = sld [smem:[#allocation12 + $0x1]]
    %s209 = sld [smem:[#allocation12 + $0x2]]
    %s210 = sld [smem:[#allocation12 + $0x3]]
    %s211 = sld [smem:[#allocation13]]
    %s212 = sld [smem:[#allocation13 + $0x1]]
    %s213 = sld [smem:[#allocation13 + $0x2]]
    %s214 = sld [smem:[#allocation13 + $0x3]]
    %s215 = sld [smem:[#allocation13 + $0x80]]
    %s216 = sld [smem:[#allocation13 + $0x81]]
    %s217 = sld [smem:[#allocation13 + $0x82]]
    %s218 = sld [smem:[#allocation13 + $0x83]]
    %s219 = sld [smem:[#allocation15]]
    %s220 = sld [smem:[#allocation15 + $0x1]]
    %s221 = sld [smem:[#allocation16]]
    %s222 = sld [smem:[#allocation16 + $0x1]]
    %s223 = sld [smem:[#allocation2]]
    %v224 = vld [vmem:[#allocation3] sm:$0xff]
    %s225 = sadd.s32 0, 8
    %s226 = scalar_lea.vmem [#allocation3], %s225
    %v227 = vld [vmem:[%s226] sm:$0xff]
    %s228 = sadd.s32 0, 16
    %s229 = scalar_lea.vmem [#allocation3], %s228
    %v230 = vld [vmem:[%s229] sm:$0xff]
    %s231 = sadd.s32 0, 24
    %s232 = scalar_lea.vmem [#allocation3], %s231
    %v233 = vld [vmem:[%s232] sm:$0xff]
    %s234 = sadd.s32 0, 32
    %s235 = scalar_lea.vmem [#allocation3], %s234
    %v236 = vld [vmem:[%s235] sm:$0xff]
    %s237 = sadd.s32 0, 40
    %s238 = scalar_lea.vmem [#allocation3], %s237
    %v239 = vld [vmem:[%s238] sm:$0xff]
    %s240 = sadd.s32 0, 48
    %s241 = scalar_lea.vmem [#allocation3], %s240
    %v242 = vld [vmem:[%s241] sm:$0xff]
    %s243 = sadd.s32 0, 56
    %s244 = scalar_lea.vmem [#allocation3], %s243
    %v245 = vld [vmem:[%s244] sm:$0xff]
    %v246 = vstv %s129
    %v247 = vmul.f32 %v224, %v246
    %v248 = vstv %s130
    %v249 = vmul.f32 %v227, %v248
    %v250 = vadd.f32 %v247, %v249
    %v251 = vstv %s131
    %v252 = vmul.f32 %v230, %v251
    %v253 = vadd.f32 %v250, %v252
    %v254 = vstv %s132
    %v255 = vmul.f32 %v233, %v254
    %v256 = vadd.f32 %v253, %v255
    %v257 = vstv %s133
    %v258 = vmul.f32 %v236, %v257
    %v259 = vadd.f32 %v256, %v258
    %v260 = vstv %s134
    %v261 = vmul.f32 %v239, %v260
    %v262 = vadd.f32 %v259, %v261
    %v263 = vstv %s135
    %v264 = vmul.f32 %v242, %v263
    %v265 = vadd.f32 %v262, %v264
    %v266 = vstv %s136
    %v267 = vmul.f32 %v245, %v266
    %v268 = vadd.f32 %v265, %v267
    %v269 = vstv %s177
    %v270 = vadd.f32 %v268, %v269
    %v271 = vand.u32 2147483647, %v270
    %v272 = vsub.f32 0.0, %v271
    %v273 = vmul.f32 %v272, 1.442695
    %v274 = vpow.pop %v273
    %vm275 = vcmp.ge.f32.partialorder %v270, 0.0
    %v276 = vsel %vm275, 1.0, %v274
    %v277 = vadd.f32 %v274, 1.0
    %v278 = vrcp.pop %v277
    %v279 = vmul.f32 %v276, %v278
    %v280 = vstv %s137
    %v281 = vmul.f32 %v224, %v280
    %v282 = vstv %s138
    %v283 = vmul.f32 %v227, %v282
    %v284 = vadd.f32 %v281, %v283
    %v285 = vstv %s139
    %v286 = vmul.f32 %v230, %v285
    %v287 = vadd.f32 %v284, %v286
    %v288 = vstv %s140
    %v289 = vmul.f32 %v233, %v288
    %v290 = vadd.f32 %v287, %v289
    %v291 = vstv %s141
    %v292 = vmul.f32 %v236, %v291
    %v293 = vadd.f32 %v290, %v292
    %v294 = vstv %s142
    %v295 = vmul.f32 %v239, %v294
    %v296 = vadd.f32 %v293, %v295
    %v297 = vstv %s143
    %v298 = vmul.f32 %v242, %v297
    %v299 = vadd.f32 %v296, %v298
    %v300 = vstv %s144
    %v301 = vmul.f32 %v245, %v300
    %v302 = vadd.f32 %v299, %v301
    %v303 = vstv %s178
    %v304 = vadd.f32 %v302, %v303
    %v305 = vand.u32 2147483647, %v304
    %v306 = vsub.f32 0.0, %v305
    %v307 = vmul.f32 %v306, 1.442695
    %v308 = vpow.pop %v307
    %vm309 = vcmp.ge.f32.partialorder %v304, 0.0
    %v310 = vsel %vm309, 1.0, %v308
    %v311 = vadd.f32 %v308, 1.0
    %v312 = vrcp.pop %v311
    %v313 = vmul.f32 %v310, %v312
    %v314 = vstv %s145
    %v315 = vmul.f32 %v224, %v314
    %v316 = vstv %s146
    %v317 = vmul.f32 %v227, %v316
    %v318 = vadd.f32 %v315, %v317
    %v319 = vstv %s147
    %v320 = vmul.f32 %v230, %v319
    %v321 = vadd.f32 %v318, %v320
    %v322 = vstv %s148
    %v323 = vmul.f32 %v233, %v322
    %v324 = vadd.f32 %v321, %v323
    %v325 = vstv %s149
    %v326 = vmul.f32 %v236, %v325
    %v327 = vadd.f32 %v324, %v326
    %v328 = vstv %s150
    %v329 = vmul.f32 %v239, %v328
    %v330 = vadd.f32 %v327, %v329
    %v331 = vstv %s151
    %v332 = vmul.f32 %v242, %v331
    %v333 = vadd.f32 %v330, %v332
    %v334 = vstv %s152
    %v335 = vmul.f32 %v245, %v334
    %v336 = vadd.f32 %v333, %v335
    %v337 = vstv %s179
    %v338 = vadd.f32 %v336, %v337
    %v339 = vand.u32 2147483647, %v338
    %v340 = vsub.f32 0.0, %v339
    %v341 = vmul.f32 %v340, 1.442695
    %v342 = vpow.pop %v341
    %vm343 = vcmp.ge.f32.partialorder %v338, 0.0
    %v344 = vsel %vm343, 1.0, %v342
    %v345 = vadd.f32 %v342, 1.0
    %v346 = vrcp.pop %v345
    %v347 = vmul.f32 %v344, %v346
    %v348 = vstv %s153
    %v349 = vmul.f32 %v224, %v348
    %v350 = vstv %s154
    %v351 = vmul.f32 %v227, %v350
    %v352 = vadd.f32 %v349, %v351
    %v353 = vstv %s155
    %v354 = vmul.f32 %v230, %v353
    %v355 = vadd.f32 %v352, %v354
    %v356 = vstv %s156
    %v357 = vmul.f32 %v233, %v356
    %v358 = vadd.f32 %v355, %v357
    %v359 = vstv %s157
    %v360 = vmul.f32 %v236, %v359
    %v361 = vadd.f32 %v358, %v360
    %v362 = vstv %s158
    %v363 = vmul.f32 %v239, %v362
    %v364 = vadd.f32 %v361, %v363
    %v365 = vstv %s159
    %v366 = vmul.f32 %v242, %v365
    %v367 = vadd.f32 %v364, %v366
    %v368 = vstv %s160
    %v369 = vmul.f32 %v245, %v368
    %v370 = vadd.f32 %v367, %v369
    %v371 = vstv %s180
    %v372 = vadd.f32 %v370, %v371
    %v373 = vand.u32 2147483647, %v372
    %v374 = vsub.f32 0.0, %v373
    %v375 = vmul.f32 %v374, 1.442695
    %v376 = vpow.pop %v375
    %vm377 = vcmp.ge.f32.partialorder %v372, 0.0
    %v378 = vsel %vm377, 1.0, %v376
    %v379 = vadd.f32 %v376, 1.0
    %v380 = vrcp.pop %v379
    %v381 = vmul.f32 %v378, %v380
    %v382 = vstv %s161
    %v383 = vmul.f32 %v224, %v382
    %v384 = vstv %s162
    %v385 = vmul.f32 %v227, %v384
    %v386 = vadd.f32 %v383, %v385
    %v387 = vstv %s163
    %v388 = vmul.f32 %v230, %v387
    %v389 = vadd.f32 %v386, %v388
    %v390 = vstv %s164
    %v391 = vmul.f32 %v233, %v390
    %v392 = vadd.f32 %v389, %v391
    %v393 = vstv %s165
    %v394 = vmul.f32 %v236, %v393
    %v395 = vadd.f32 %v392, %v394
    %v396 = vstv %s166
    %v397 = vmul.f32 %v239, %v396
    %v398 = vadd.f32 %v395, %v397
    %v399 = vstv %s167
    %v400 = vmul.f32 %v242, %v399
    %v401 = vadd.f32 %v398, %v400
    %v402 = vstv %s168
    %v403 = vmul.f32 %v245, %v402
    %v404 = vadd.f32 %v401, %v403
    %v405 = vstv %s181
    %v406 = vadd.f32 %v404, %v405
    %v407 = vand.u32 2147483647, %v406
    %v408 = vsub.f32 0.0, %v407
    %v409 = vmul.f32 %v408, 1.442695
    %v410 = vpow.pop %v409
    %vm411 = vcmp.ge.f32.partialorder %v406, 0.0
    %v412 = vsel %vm411, 1.0, %v410
    %v413 = vadd.f32 %v410, 1.0
    %v414 = vrcp.pop %v413
    %v415 = vmul.f32 %v412, %v414
    %v416 = vstv %s169
    %v417 = vmul.f32 %v224, %v416
    %v418 = vstv %s170
    %v419 = vmul.f32 %v227, %v418
    %v420 = vadd.f32 %v417, %v419
    %v421 = vstv %s171
    %v422 = vmul.f32 %v230, %v421
    %v423 = vadd.f32 %v420, %v422
    %v424 = vstv %s172
    %v425 = vmul.f32 %v233, %v424
    %v426 = vadd.f32 %v423, %v425
    %v427 = vstv %s173
    %v428 = vmul.f32 %v236, %v427
    %v429 = vadd.f32 %v426, %v428
    %v430 = vstv %s174
    %v431 = vmul.f32 %v239, %v430
    %v432 = vadd.f32 %v429, %v431
    %v433 = vstv %s175
    %v434 = vmul.f32 %v242, %v433
    %v435 = vadd.f32 %v432, %v434
    %v436 = vstv %s176
    %v437 = vmul.f32 %v245, %v436
    %v438 = vadd.f32 %v435, %v437
    %v439 = vstv %s182
    %v440 = vadd.f32 %v438, %v439
    %v441 = vand.u32 2147483647, %v440
    %v442 = vsub.f32 0.0, %v441
    %v443 = vmul.f32 %v442, 1.442695
    %v444 = vpow.pop %v443
    %vm445 = vcmp.ge.f32.partialorder %v440, 0.0
    %v446 = vsel %vm445, 1.0, %v444
    %v447 = vadd.f32 %v444, 1.0
    %v448 = vrcp.pop %v447
    %v449 = vmul.f32 %v446, %v448
    %v450 = vstv %s183
    %v451 = vmul.f32 %v279, %v450
    %v452 = vstv %s184
    %v453 = vmul.f32 %v313, %v452
    %v454 = vadd.f32 %v451, %v453
    %v455 = vstv %s185
    %v456 = vmul.f32 %v347, %v455
    %v457 = vadd.f32 %v454, %v456
    %v458 = vstv %s186
    %v459 = vmul.f32 %v381, %v458
    %v460 = vadd.f32 %v457, %v459
    %v461 = vstv %s187
    %v462 = vmul.f32 %v415, %v461
    %v463 = vadd.f32 %v460, %v462
    %v464 = vstv %s188
    %v465 = vmul.f32 %v449, %v464
    %v466 = vadd.f32 %v463, %v465
    %v467 = vstv %s207
    %v468 = vadd.f32 %v466, %v467
    %v469 = vand.u32 2147483647, %v468
    %v470 = vsub.f32 0.0, %v469
    %v471 = vmul.f32 %v470, 1.442695
    %v472 = vpow.pop %v471
    %vm473 = vcmp.ge.f32.partialorder %v468, 0.0
    %v474 = vsel %vm473, 1.0, %v472
    %v475 = vadd.f32 %v472, 1.0
    %v476 = vrcp.pop %v475
    %v477 = vmul.f32 %v474, %v476
    %v478 = vstv %s189
    %v479 = vmul.f32 %v279, %v478
    %v480 = vstv %s190
    %v481 = vmul.f32 %v313, %v480
    %v482 = vadd.f32 %v479, %v481
    %v483 = vstv %s191
    %v484 = vmul.f32 %v347, %v483
    %v485 = vadd.f32 %v482, %v484
    %v486 = vstv %s192
    %v487 = vmul.f32 %v381, %v486
    %v488 = vadd.f32 %v485, %v487
    %v489 = vstv %s193
    %v490 = vmul.f32 %v415, %v489
    %v491 = vadd.f32 %v488, %v490
    %v492 = vstv %s194
    %v493 = vmul.f32 %v449, %v492
    %v494 = vadd.f32 %v491, %v493
    %v495 = vstv %s208
    %v496 = vadd.f32 %v494, %v495
    %v497 = vand.u32 2147483647, %v496
    %v498 = vsub.f32 0.0, %v497
    %v499 = vmul.f32 %v498, 1.442695
    %v500 = vpow.pop %v499
    %vm501 = vcmp.ge.f32.partialorder %v496, 0.0
    %v502 = vsel %vm501, 1.0, %v500
    %v503 = vadd.f32 %v500, 1.0
    %v504 = vrcp.pop %v503
    %v505 = vmul.f32 %v502, %v504
    %v506 = vstv %s195
    %v507 = vmul.f32 %v279, %v506
    %v508 = vstv %s196
    %v509 = vmul.f32 %v313, %v508
    %v510 = vadd.f32 %v507, %v509
    %v511 = vstv %s197
    %v512 = vmul.f32 %v347, %v511
    %v513 = vadd.f32 %v510, %v512
    %v514 = vstv %s198
    %v515 = vmul.f32 %v381, %v514
    %v516 = vadd.f32 %v513, %v515
    %v517 = vstv %s199
    %v518 = vmul.f32 %v415, %v517
    %v519 = vadd.f32 %v516, %v518
    %v520 = vstv %s200
    %v521 = vmul.f32 %v449, %v520
    %v522 = vadd.f32 %v519, %v521
    %v523 = vstv %s209
    %v524 = vadd.f32 %v522, %v523
    %v525 = vand.u32 2147483647, %v524
    %v526 = vsub.f32 0.0, %v525
    %v527 = vmul.f32 %v526, 1.442695
    %v528 = vpow.pop %v527
    %vm529 = vcmp.ge.f32.partialorder %v524, 0.0
    %v530 = vsel %vm529, 1.0, %v528
    %v531 = vadd.f32 %v528, 1.0
    %v532 = vrcp.pop %v531
    %v533 = vmul.f32 %v530, %v532
    %v534 = vstv %s201
    %v535 = vmul.f32 %v279, %v534
    %v536 = vstv %s202
    %v537 = vmul.f32 %v313, %v536
    %v538 = vadd.f32 %v535, %v537
    %v539 = vstv %s203
    %v540 = vmul.f32 %v347, %v539
    %v541 = vadd.f32 %v538, %v540
    %v542 = vstv %s204
    %v543 = vmul.f32 %v381, %v542
    %v544 = vadd.f32 %v541, %v543
    %v545 = vstv %s205
    %v546 = vmul.f32 %v415, %v545
    %v547 = vadd.f32 %v544, %v546
    %v548 = vstv %s206
    %v549 = vmul.f32 %v449, %v548
    %v550 = vadd.f32 %v547, %v549
    %v551 = vstv %s210
    %v552 = vadd.f32 %v550, %v551
    %v553 = vand.u32 2147483647, %v552
    %v554 = vsub.f32 0.0, %v553
    %v555 = vmul.f32 %v554, 1.442695
    %v556 = vpow.pop %v555
    %vm557 = vcmp.ge.f32.partialorder %v552, 0.0
    %v558 = vsel %vm557, 1.0, %v556
    %v559 = vadd.f32 %v556, 1.0
    %v560 = vrcp.pop %v559
    %v561 = vmul.f32 %v558, %v560
    %v562 = vstv %s211
    %v563 = vmul.f32 %v477, %v562
    %v564 = vstv %s212
    %v565 = vmul.f32 %v505, %v564
    %v566 = vadd.f32 %v563, %v565
    %v567 = vstv %s213
    %v568 = vmul.f32 %v533, %v567
    %v569 = vadd.f32 %v566, %v568
    %v570 = vstv %s214
    %v571 = vmul.f32 %v561, %v570
    %v572 = vadd.f32 %v569, %v571
    %v573 = vstv %s219
    %v574 = vadd.f32 %v572, %v573
    %v575 = vand.u32 2147483647, %v574
    %v576 = vsub.f32 0.0, %v575
    %v577 = vmul.f32 %v576, 1.442695
    %v578 = vpow.pop %v577
    %vm579 = vcmp.ge.f32.partialorder %v574, 0.0
    %v580 = vsel %vm579, 1.0, %v578
    %v581 = vadd.f32 %v578, 1.0
    %v582 = vrcp.pop %v581
    %v583 = vmul.f32 %v580, %v582
    %v584 = vstv %s215
    %v585 = vmul.f32 %v477, %v584
    %v586 = vstv %s216
    %v587 = vmul.f32 %v505, %v586
    %v588 = vadd.f32 %v585, %v587
    %v589 = vstv %s217
    %v590 = vmul.f32 %v533, %v589
    %v591 = vadd.f32 %v588, %v590
    %v592 = vstv %s218
    %v593 = vmul.f32 %v561, %v592
    %v594 = vadd.f32 %v591, %v593
    %v595 = vstv %s220
    %v596 = vadd.f32 %v594, %v595
    %v597 = vand.u32 2147483647, %v596
    %v598 = vsub.f32 0.0, %v597
    %v599 = vmul.f32 %v598, 1.442695
    %v600 = vpow.pop %v599
    %vm601 = vcmp.ge.f32.partialorder %v596, 0.0
    %v602 = vsel %vm601, 1.0, %v600
    %v603 = vadd.f32 %v600, 1.0
    %v604 = vrcp.pop %v603
    %v605 = vmul.f32 %v602, %v604
    %v606 = vstv %s221
    %v607 = vmul.f32 %v583, %v606
    %v608 = vstv %s222
    %v609 = vmul.f32 %v605, %v608
    %v610 = vadd.f32 %v607, %v609
    %v611 = vstv %s223
    %v612 = vadd.f32 %v610, %v611
    %v613 = vand.u32 2147483647, %v612
    %v614 = vsub.f32 0.0, %v613
    %v615 = vmul.f32 %v614, 1.442695
    %v616 = vpow.pop %v615
    %vm617 = vcmp.ge.f32.partialorder %v612, 0.0
    %v618 = vsel %vm617, 1.0, %v616
    %v619 = vadd.f32 %v616, 1.0
    %v620 = vrcp.pop %v619
    %v621 = vmul.f32 %v618, %v620
    %622 = vst [vmem:[#allocation18] sm:$0xff] %v621
    // Predicated region
    $region70: #{tpu_custom_call.1} parent=1 // pred_check
      _
    $region71: #{tpu_custom_call.1} parent=1 // pred_check_branch
      %624 = sbr.rel (0) target = $region73
    $region72: #{tpu_custom_call.1} parent=1 // pred_region
      %s626 = ssub.s32 128, 128
      %627 = vsyncadd [#allocation5], %s626
      %s629 = sshll.u32 [#allocation18], 4
      %s630 = int_to_ptr.vmem [resolvable:$true] %s629
      %632 = dma.vmem_to_hbm [thread:$0]  %s630, 128, %s9, [#allocation5]
    $region73: #{tpu_custom_call.1} parent=1 // pred_fallthru
      _
    // Predicated region
    $region74: #{tpu_custom_call.1} parent=1 // pred_check
      _
    $region75: #{tpu_custom_call.1} parent=1 // pred_check_branch
      %634 = sbr.rel (0) target = $region77
    $region76: #{tpu_custom_call.1} parent=1 // pred_region
      %635 = dma.done [#allocation5], 128
    $region77: #{tpu_custom_call.1} parent=1 // pred_fallthru
      _
    %636 = vsyncpa [#allocation4], 1
    %637 = vsyncpa [#allocation5], 1
    %638 = vsyncpa [#allocation6], 1
    %639 = vsyncpa [#allocation7], 1
    %640 = vsyncpa [#allocation11], 1
    %641 = vsyncpa [#allocation14], 1
    %642 = vsyncpa [#allocation17], 1

</llo_original>
